<compile_context>
chip_gen: v5e
topology: v5e:2x2
jax: 0.10.0
libtpu: 0.0.40
codegen_flags: <defaults>
</compile_context>

<pallas_src>
import jax
import jax.numpy as jnp
import numpy as np
from jax import lax
from jax.experimental import pallas as pl
from jax.experimental.pallas import tpu as pltpu

TE = 128          # edges per grid step (maps to TPU lanes)
LANE = 128        # hidden dim padded up to a multiple of this
SUBLANE = 8       # f32 sublane count; node dim padded to a multiple of this


def _round_up(x, m):
    return (x + m - 1) // m * m


def catalyst_gnn_kernel(
    # inputs
    nf_ref,        # [Np, Hp]   node features (zero-padded)
    src_ref,       # [1, 1, TE] int32 src node index per edge of this tile
    dst_ref,       # [1, 1, TE] int32 dst node index per edge of this tile
    w1m_s_ref, w1m_d_ref, b1m_ref,   # message_net.0, concat split + bias
    w2m_ref, b2m_ref,                # message_net.2
    w1u_n_ref, w1u_m_ref, b1u_ref,   # update_net.0, concat split + bias
    w2u_ref, b2u_ref,                # update_net.2
    # outputs
    out_ref,       # [Np, Hp]
    # scratch (persists across the edge-tile grid)
    p_s_ref,       # [Np, Hp]  nf @ W1m_src            (hoisted first layer)
    p_d_ref,       # [Np, Hp]  nf @ W1m_dst + b1m
    msg_ref,       # [Np, Hp]  scatter-add accumulator
):
    t = pl.program_id(0)
    n_tiles = pl.num_programs(0)
    Np = nf_ref.shape[0]

    # ---- one-time node-side work: hoist message_net layer 1 to nodes -------
    @pl.when(t == 0)
    def _init():
        nf = nf_ref[...]
        p_s_ref[...] = jnp.dot(nf, w1m_s_ref[...],
                               preferred_element_type=jnp.float32)
        p_d_ref[...] = (jnp.dot(nf, w1m_d_ref[...],
                                preferred_element_type=jnp.float32)
                        + b1m_ref[...])
        msg_ref[...] = jnp.zeros_like(msg_ref)

    # ---- per-edge-tile messages + scatter-add -------------------------------
    src_row = src_ref[0]                                   # [1, TE] int32
    dst_row = dst_ref[0]                                   # [1, TE] int32
    node_iota = lax.broadcasted_iota(jnp.int32, (Np, TE), 0)
    # Transposed one-hots built in-kernel (no [E,N] HBM traffic or residency).
    # Padded edges use sentinel index == Np -> all-zero column -> no effect.
    sohT = (node_iota == src_row).astype(jnp.float32)      # [Np, TE]
    dohT = (node_iota == dst_row).astype(jnp.float32)      # [Np, TE]

    cdim = (((0,), (0,)), ((), ()))                        # contract axis 0 / axis 0
    x_ps = lax.dot_general(sohT, p_s_ref[...], cdim,
                           preferred_element_type=jnp.float32)   # [TE,Hp] = p_s[src]
    x_pd = lax.dot_general(dohT, p_d_ref[...], cdim,
                           preferred_element_type=jnp.float32)   # [TE,Hp] = p_d[dst]+b1m

    h = jnp.maximum(x_ps + x_pd, 0.0)
    msg = jnp.dot(h, w2m_ref[...], preferred_element_type=jnp.float32) + b2m_ref[...]

    # Scatter-add to destination nodes: dohT @ msg (no materialized transpose).
    msg_ref[...] += jnp.dot(dohT, msg, preferred_element_type=jnp.float32)

    # ---- finalize: update_net on nodes --------------------------------------
    @pl.when(t == n_tiles - 1)
    def _finalize():
        nf = nf_ref[...]
        h2 = (jnp.dot(nf, w1u_n_ref[...], preferred_element_type=jnp.float32)
              + jnp.dot(msg_ref[...], w1u_m_ref[...],
                        preferred_element_type=jnp.float32)
              + b1u_ref[...])
        h2 = jnp.maximum(h2, 0.0)
        out_ref[...] = (jnp.dot(h2, w2u_ref[...],
                                preferred_element_type=jnp.float32)
                        + b2u_ref[...])


def catalyst_gnn_layer(node_features, edge_indices, params):
    """node_features: [N, H] f32; edge_indices: [E, 2] int32 (src, dst)."""
    N, H = node_features.shape
    E = edge_indices.shape[0]

    Np = _round_up(max(N, SUBLANE), SUBLANE)
    Hp = _round_up(max(H, LANE), LANE)
    Ep = _round_up(max(E, TE), TE)
    n_tiles = Ep // TE

    # --- zero-pad features / weights to lane-dense shapes -------------------
    nf = jnp.zeros((Np, Hp), jnp.float32).at[:N, :H].set(node_features)

    def pad_w(w):   # [H, H] -> [Hp, Hp]
        return jnp.zeros((Hp, Hp), jnp.float32).at[:H, :H].set(w)

    def pad_b(b):   # [H] -> [1, Hp]
        return jnp.zeros((1, Hp), jnp.float32).at[0, :H].set(b)

    w1m, b1m, w2m, b2m = params["w1m"], params["b1m"], params["w2m"], params["b2m"]
    w1u, b1u, w2u, b2u = params["w1u"], params["b1u"], params["w2u"], params["b2u"]
    w1m_s, w1m_d = pad_w(w1m[:H]), pad_w(w1m[H:])
    w1u_n, w1u_m = pad_w(w1u[:H]), pad_w(w1u[H:])
    w2m_p, w2u_p = pad_w(w2m), pad_w(w2u)
    b1m_p, b2m_p, b1u_p, b2u_p = pad_b(b1m), pad_b(b2m), pad_b(b1u), pad_b(b2u)

    # --- pad edge lists; sentinel index Np (out of range) => no contribution -
    src = jnp.full((Ep,), Np, jnp.int32).at[:E].set(edge_indices[:, 0].astype(jnp.int32))
    dst = jnp.full((Ep,), Np, jnp.int32).at[:E].set(edge_indices[:, 1].astype(jnp.int32))
    src = src.reshape(n_tiles, 1, TE)
    dst = dst.reshape(n_tiles, 1, TE)

    def full_spec(shape):
        return pl.BlockSpec(shape, lambda t: (0,) * len(shape))

    idx_spec = pl.BlockSpec((1, 1, TE), lambda t: (t, 0, 0))

    # VMEM budget: resident node arrays + weights + per-tile temporaries,
    # x2 for double buffering, plus margin; never below the 32 MiB default.
    resident = 5 * Np * Hp + 6 * Hp * Hp + 4 * Hp
    per_tile = 2 * Np * TE + 6 * TE * Hp + 2 * Np * Hp + 2 * TE
    vmem_limit = min(max(8 * (resident + per_tile) + (4 << 20), 32 << 20), 120 << 20)

    out = pl.pallas_call(
        catalyst_gnn_kernel,
        out_shape=jax.ShapeDtypeStruct((Np, Hp), jnp.float32),
        grid_spec=pltpu.PrefetchScalarGridSpec(
            num_scalar_prefetch=0,
            grid=(n_tiles,),
            in_specs=[
                full_spec((Np, Hp)),                       # nf
                idx_spec, idx_spec,                        # src / dst edge tiles
                full_spec((Hp, Hp)), full_spec((Hp, Hp)), full_spec((1, Hp)),  # w1m_s, w1m_d, b1m
                full_spec((Hp, Hp)), full_spec((1, Hp)),                       # w2m, b2m
                full_spec((Hp, Hp)), full_spec((Hp, Hp)), full_spec((1, Hp)),  # w1u_n, w1u_m, b1u
                full_spec((Hp, Hp)), full_spec((1, Hp)),                       # w2u, b2u
            ],
            out_specs=full_spec((Np, Hp)),
            scratch_shapes=[
                pltpu.VMEM((Np, Hp), jnp.float32),   # p_s
                pltpu.VMEM((Np, Hp), jnp.float32),   # p_d
                pltpu.VMEM((Np, Hp), jnp.float32),   # messages accumulator
            ],
        ),
        compiler_params=pltpu.CompilerParams(
            dimension_semantics=("arbitrary",),       # edge axis is a reduction
            vmem_limit_bytes=int(vmem_limit),
        ),
    )(
        nf, src, dst,
        w1m_s, w1m_d, b1m_p, w2m_p, b2m_p,
        w1u_n, w1u_m, b1u_p, w2u_p, b2u_p,
    )
    # TODO(synk): for very large N, replace the per-tile [N,TE] one-hot
    # gather/scatter with a manual DMA row gather + node-tiled accumulator.
    return out[:N, :H]


def reference_forward(node_features, edge_indices, params):
    """Pure-JAX reference mirroring the PyTorch loop semantics."""
    N, H = node_features.shape
    src = edge_indices[:, 0]
    dst = edge_indices[:, 1]
    x_src = node_features[src]
    x_dst = node_features[dst]
    edge_in = jnp.concatenate([x_src, x_dst], axis=-1)
    h = jnp.maximum(edge_in @ params["w1m"] + params["b1m"], 0.0)
    msg = h @ params["w2m"] + params["b2m"]
    messages = jax.ops.segment_sum(msg, dst, num_segments=N)
    upd_in = jnp.concatenate([node_features, messages], axis=-1)
    h2 = jnp.maximum(upd_in @ params["w1u"] + params["b1u"], 0.0)
    return h2 @ params["w2u"] + params["b2u"]


def init_params(key, hidden_dim):
    """Weights stored as [in, out] (transpose of torch nn.Linear.weight)."""
    H = hidden_dim
    ks = jax.random.split(key, 8)
    scale2h = 1.0 / np.sqrt(2 * H)
    scaleh = 1.0 / np.sqrt(H)
    return {
        "w1m": jax.random.uniform(ks[0], (2 * H, H), jnp.float32, -scale2h, scale2h),
        "b1m": jax.random.uniform(ks[1], (H,), jnp.float32, -scale2h, scale2h),
        "w2m": jax.random.uniform(ks[2], (H, H), jnp.float32, -scaleh, scaleh),
        "b2m": jax.random.uniform(ks[3], (H,), jnp.float32, -scaleh, scaleh),
        "w1u": jax.random.uniform(ks[4], (2 * H, H), jnp.float32, -scale2h, scale2h),
        "b1u": jax.random.uniform(ks[5], (H,), jnp.float32, -scale2h, scale2h),
        "w2u": jax.random.uniform(ks[6], (H, H), jnp.float32, -scaleh, scaleh),
        "b2u": jax.random.uniform(ks[7], (H,), jnp.float32, -scaleh, scaleh),
    }


if __name__ == "__main__":
    N_NODES = 8
    HIDDEN = 32
    N_EDGES = 200   # > TE so the edge-tile grid/accumulator path is exercised

    key = jax.random.PRNGKey(0)
    k_feat, k_src, k_dst, k_par = jax.random.split(key, 4)

    node_features = jax.random.normal(k_feat, (N_NODES, HIDDEN), jnp.float32)
    src = jax.random.randint(k_src, (N_EDGES,), 0, N_NODES, jnp.int32)
    dst = jax.random.randint(k_dst, (N_EDGES,), 0, N_NODES, jnp.int32)
    edge_indices = jnp.stack([src, dst], axis=-1)  # [E, 2]

    params = init_params(k_par, HIDDEN)

    out = catalyst_gnn_layer(node_features, edge_indices, params)
    out = jax.block_until_ready(out)

    ref = reference_forward(node_features, edge_indices, params)
    np.testing.assert_allclose(np.asarray(out), np.asarray(ref), rtol=1e-5, atol=1e-5)

    print("KERNEL_OK")
</pallas_src>

<mosaic_0001>
module attributes {stable_mosaic.version = 11 : i64} {
  func.func @catalyst_gnn_kernel(%arg0: i32, %arg1: memref<8x128xf32, #tpu.memory_space<vmem>>, %arg2: memref<1x1x128xi32, #tpu.memory_space<vmem>>, %arg3: memref<1x1x128xi32, #tpu.memory_space<vmem>>, %arg4: memref<128x128xf32, #tpu.memory_space<vmem>>, %arg5: memref<128x128xf32, #tpu.memory_space<vmem>>, %arg6: memref<1x128xf32, #tpu.memory_space<vmem>>, %arg7: memref<128x128xf32, #tpu.memory_space<vmem>>, %arg8: memref<1x128xf32, #tpu.memory_space<vmem>>, %arg9: memref<128x128xf32, #tpu.memory_space<vmem>>, %arg10: memref<128x128xf32, #tpu.memory_space<vmem>>, %arg11: memref<1x128xf32, #tpu.memory_space<vmem>>, %arg12: memref<128x128xf32, #tpu.memory_space<vmem>>, %arg13: memref<1x128xf32, #tpu.memory_space<vmem>>, %arg14: memref<8x128xf32, #tpu.memory_space<vmem>>, %arg15: memref<8x128xf32, #tpu.memory_space<vmem>>, %arg16: memref<8x128xf32, #tpu.memory_space<vmem>>, %arg17: memref<8x128xf32, #tpu.memory_space<vmem>>) attributes {dimension_semantics = [#tpu.dimension_semantics<arbitrary>], iteration_bounds = array<i64: 2>, scalar_prefetch = 0 : i64, scratch_operands = 3 : i64, tpu.core_type = #tpu.core_type<tc>, window_params = [{pipeline_mode = #tpu.pipeline_mode<synchronous>, transform_indices = @transform_0, window_bounds = array<i64: 8, 128>}, {transform_indices = @transform_1, window_bounds = array<i64: 1, 1, 128>}, {transform_indices = @transform_2, window_bounds = array<i64: 1, 1, 128>}, {pipeline_mode = #tpu.pipeline_mode<synchronous>, transform_indices = @transform_3, window_bounds = array<i64: 128, 128>}, {pipeline_mode = #tpu.pipeline_mode<synchronous>, transform_indices = @transform_4, window_bounds = array<i64: 128, 128>}, {pipeline_mode = #tpu.pipeline_mode<synchronous>, transform_indices = @transform_5, window_bounds = array<i64: 1, 128>}, {pipeline_mode = #tpu.pipeline_mode<synchronous>, transform_indices = @transform_6, window_bounds = array<i64: 128, 128>}, {pipeline_mode = #tpu.pipeline_mode<synchronous>, transform_indices = @transform_7, window_bounds = array<i64: 1, 128>}, {pipeline_mode = #tpu.pipeline_mode<synchronous>, transform_indices = @transform_8, window_bounds = array<i64: 128, 128>}, {pipeline_mode = #tpu.pipeline_mode<synchronous>, transform_indices = @transform_9, window_bounds = array<i64: 128, 128>}, {pipeline_mode = #tpu.pipeline_mode<synchronous>, transform_indices = @transform_10, window_bounds = array<i64: 1, 128>}, {pipeline_mode = #tpu.pipeline_mode<synchronous>, transform_indices = @transform_11, window_bounds = array<i64: 128, 128>}, {pipeline_mode = #tpu.pipeline_mode<synchronous>, transform_indices = @transform_12, window_bounds = array<i64: 1, 128>}, {pipeline_mode = #tpu.pipeline_mode<synchronous>, transform_indices = @transform_13, window_bounds = array<i64: 8, 128>}]} {
    %c0_i32 = arith.constant 0 : i32
    %0 = arith.cmpi eq, %arg0, %c0_i32 : i32
    %1 = arith.extui %0 : i1 to i32
    %c0_i32_0 = arith.constant 0 : i32
    %2 = arith.cmpi ne, %1, %c0_i32_0 : i32
    scf.if %2 {
      %c0_23 = arith.constant 0 : index
      %c0_24 = arith.constant 0 : index
      %35 = vector.load %arg1[%c0_23, %c0_24] : memref<8x128xf32, #tpu.memory_space<vmem>>, vector<8x128xf32>
      %c0_25 = arith.constant 0 : index
      %c0_26 = arith.constant 0 : index
      %36 = vector.load %arg4[%c0_25, %c0_26] : memref<128x128xf32, #tpu.memory_space<vmem>>, vector<128x128xf32>
      %cst_27 = arith.constant dense<0.000000e+00> : vector<8x128xf32>
      %37 = tpu.matmul %35, %36, %cst_27 {dimension_numbers = #tpu.dot_dimension_numbers<[1], [0], [0], [1], [0, 0, 1, 1], [], []>} : vector<8x128xf32>, vector<128x128xf32>, vector<8x128xf32> -> vector<8x128xf32>
      %c0_28 = arith.constant 0 : index
      %c0_29 = arith.constant 0 : index
      %38 = vector.load %arg15[%c0_28, %c0_29] : memref<8x128xf32, #tpu.memory_space<vmem>>, vector<8x128xf32>
      tpu.vector_store %arg15[%c0_28, %c0_29], %37 {strides = array<i32>} : memref<8x128xf32, #tpu.memory_space<vmem>>, vector<8x128xf32>,
      %c0_30 = arith.constant 0 : index
      %c0_31 = arith.constant 0 : index
      %39 = vector.load %arg5[%c0_30, %c0_31] : memref<128x128xf32, #tpu.memory_space<vmem>>, vector<128x128xf32>
      %cst_32 = arith.constant dense<0.000000e+00> : vector<8x128xf32>
      %40 = tpu.matmul %35, %39, %cst_32 {dimension_numbers = #tpu.dot_dimension_numbers<[1], [0], [0], [1], [0, 0, 1, 1], [], []>} : vector<8x128xf32>, vector<128x128xf32>, vector<8x128xf32> -> vector<8x128xf32>
      %c0_33 = arith.constant 0 : index
      %c0_34 = arith.constant 0 : index
      %41 = vector.load %arg6[%c0_33, %c0_34] : memref<1x128xf32, #tpu.memory_space<vmem>>, vector<1x128xf32>
      %42 = vector.broadcast %41 : vector<1x128xf32> to vector<8x128xf32>
      %43 = arith.addf %40, %42 : vector<8x128xf32>
      %c0_35 = arith.constant 0 : index
      %c0_36 = arith.constant 0 : index
      %44 = vector.load %arg16[%c0_35, %c0_36] : memref<8x128xf32, #tpu.memory_space<vmem>>, vector<8x128xf32>
      tpu.vector_store %arg16[%c0_35, %c0_36], %43 {strides = array<i32>} : memref<8x128xf32, #tpu.memory_space<vmem>>, vector<8x128xf32>,
      %cst_37 = arith.constant 0.000000e+00 : f32
      %45 = vector.broadcast %cst_37 : f32 to vector<8x128xf32>
      %c0_38 = arith.constant 0 : index
      %c0_39 = arith.constant 0 : index
      %46 = vector.load %arg17[%c0_38, %c0_39] : memref<8x128xf32, #tpu.memory_space<vmem>>, vector<8x128xf32>
      tpu.vector_store %arg17[%c0_38, %c0_39], %45 {strides = array<i32>} : memref<8x128xf32, #tpu.memory_space<vmem>>, vector<8x128xf32>,
    } else {
    }
    %c0 = arith.constant 0 : index
    %c0_1 = arith.constant 0 : index
    %c0_2 = arith.constant 0 : index
    %3 = vector.load %arg2[%c0, %c0_1, %c0_2] : memref<1x1x128xi32, #tpu.memory_space<vmem>>, vector<1x1x128xi32>
    %4 = vector.shape_cast %3 : vector<1x1x128xi32> to vector<1x128xi32>
    %c0_3 = arith.constant 0 : index
    %c0_4 = arith.constant 0 : index
    %c0_5 = arith.constant 0 : index
    %5 = vector.load %arg3[%c0_3, %c0_4, %c0_5] : memref<1x1x128xi32, #tpu.memory_space<vmem>>, vector<1x1x128xi32>
    %6 = vector.shape_cast %5 : vector<1x1x128xi32> to vector<1x128xi32>
    %7 = tpu.iota {dimensions = array<i32: 0>} : vector<8x128xi32>
    %8 = vector.broadcast %4 : vector<1x128xi32> to vector<8x128xi32>
    %9 = arith.cmpi eq, %7, %8 : vector<8x128xi32>
    %10 = arith.extui %9 : vector<8x128xi1> to vector<8x128xi32>
    %11 = arith.sitofp %10 : vector<8x128xi32> to vector<8x128xf32>
    %12 = vector.broadcast %6 : vector<1x128xi32> to vector<8x128xi32>
    %13 = arith.cmpi eq, %7, %12 : vector<8x128xi32>
    %14 = arith.extui %13 : vector<8x128xi1> to vector<8x128xi32>
    %15 = arith.sitofp %14 : vector<8x128xi32> to vector<8x128xf32>
    %c0_6 = arith.constant 0 : index
    %c0_7 = arith.constant 0 : index
    %16 = vector.load %arg15[%c0_6, %c0_7] : memref<8x128xf32, #tpu.memory_space<vmem>>, vector<8x128xf32>
    %cst = arith.constant dense<0.000000e+00> : vector<128x128xf32>
    %17 = tpu.matmul %11, %16, %cst {dimension_numbers = #tpu.dot_dimension_numbers<[0], [0], [1], [1], [0, 1, 1, 1], [], []>} : vector<8x128xf32>, vector<8x128xf32>, vector<128x128xf32> -> vector<128x128xf32>
    %c0_8 = arith.constant 0 : index
    %c0_9 = arith.constant 0 : index
    %18 = vector.load %arg16[%c0_8, %c0_9] : memref<8x128xf32, #tpu.memory_space<vmem>>, vector<8x128xf32>
    %cst_10 = arith.constant dense<0.000000e+00> : vector<128x128xf32>
    %19 = tpu.matmul %15, %18, %cst_10 {dimension_numbers = #tpu.dot_dimension_numbers<[0], [0], [1], [1], [0, 1, 1, 1], [], []>} : vector<8x128xf32>, vector<8x128xf32>, vector<128x128xf32> -> vector<128x128xf32>
    %20 = arith.addf %17, %19 : vector<128x128xf32>
    %cst_11 = arith.constant 0.000000e+00 : f32
    %21 = vector.broadcast %cst_11 : f32 to vector<128x128xf32>
    %22 = arith.maximumf %20, %21 : vector<128x128xf32>
    %c0_12 = arith.constant 0 : index
    %c0_13 = arith.constant 0 : index
    %23 = vector.load %arg7[%c0_12, %c0_13] : memref<128x128xf32, #tpu.memory_space<vmem>>, vector<128x128xf32>
    %cst_14 = arith.constant dense<0.000000e+00> : vector<128x128xf32>
    %24 = tpu.matmul %22, %23, %cst_14 {dimension_numbers = #tpu.dot_dimension_numbers<[1], [0], [0], [1], [0, 0, 1, 1], [], []>} : vector<128x128xf32>, vector<128x128xf32>, vector<128x128xf32> -> vector<128x128xf32>
    %c0_15 = arith.constant 0 : index
    %c0_16 = arith.constant 0 : index
    %25 = vector.load %arg8[%c0_15, %c0_16] : memref<1x128xf32, #tpu.memory_space<vmem>>, vector<1x128xf32>
    %26 = vector.broadcast %25 : vector<1x128xf32> to vector<128x128xf32>
    %27 = arith.addf %24, %26 : vector<128x128xf32>
    %c0_17 = arith.constant 0 : index
    %c0_18 = arith.constant 0 : index
    %28 = vector.load %arg17[%c0_17, %c0_18] : memref<8x128xf32, #tpu.memory_space<vmem>>, vector<8x128xf32>
    %cst_19 = arith.constant dense<0.000000e+00> : vector<8x128xf32>
    %29 = tpu.matmul %15, %27, %cst_19 {dimension_numbers = #tpu.dot_dimension_numbers<[1], [0], [0], [1], [0, 0, 1, 1], [], []>} : vector<8x128xf32>, vector<128x128xf32>, vector<8x128xf32> -> vector<8x128xf32>
    %30 = arith.addf %28, %29 : vector<8x128xf32>
    %c0_20 = arith.constant 0 : index
    %c0_21 = arith.constant 0 : index
    %31 = vector.load %arg17[%c0_20, %c0_21] : memref<8x128xf32, #tpu.memory_space<vmem>>, vector<8x128xf32>
    tpu.vector_store %arg17[%c0_20, %c0_21], %30 {strides = array<i32>} : memref<8x128xf32, #tpu.memory_space<vmem>>, vector<8x128xf32>,
    %c1_i32 = arith.constant 1 : i32
    %32 = arith.cmpi eq, %arg0, %c1_i32 : i32
    %33 = arith.extui %32 : i1 to i32
    %c0_i32_22 = arith.constant 0 : i32
    %34 = arith.cmpi ne, %33, %c0_i32_22 : i32
    scf.if %34 {
      %c0_23 = arith.constant 0 : index
      %c0_24 = arith.constant 0 : index
      %35 = vector.load %arg1[%c0_23, %c0_24] : memref<8x128xf32, #tpu.memory_space<vmem>>, vector<8x128xf32>
      %c0_25 = arith.constant 0 : index
      %c0_26 = arith.constant 0 : index
      %36 = vector.load %arg9[%c0_25, %c0_26] : memref<128x128xf32, #tpu.memory_space<vmem>>, vector<128x128xf32>
      %cst_27 = arith.constant dense<0.000000e+00> : vector<8x128xf32>
      %37 = tpu.matmul %35, %36, %cst_27 {dimension_numbers = #tpu.dot_dimension_numbers<[1], [0], [0], [1], [0, 0, 1, 1], [], []>} : vector<8x128xf32>, vector<128x128xf32>, vector<8x128xf32> -> vector<8x128xf32>
      %c0_28 = arith.constant 0 : index
      %c0_29 = arith.constant 0 : index
      %38 = vector.load %arg17[%c0_28, %c0_29] : memref<8x128xf32, #tpu.memory_space<vmem>>, vector<8x128xf32>
      %c0_30 = arith.constant 0 : index
      %c0_31 = arith.constant 0 : index
      %39 = vector.load %arg10[%c0_30, %c0_31] : memref<128x128xf32, #tpu.memory_space<vmem>>, vector<128x128xf32>
      %cst_32 = arith.constant dense<0.000000e+00> : vector<8x128xf32>
      %40 = tpu.matmul %38, %39, %cst_32 {dimension_numbers = #tpu.dot_dimension_numbers<[1], [0], [0], [1], [0, 0, 1, 1], [], []>} : vector<8x128xf32>, vector<128x128xf32>, vector<8x128xf32> -> vector<8x128xf32>
      %41 = arith.addf %37, %40 : vector<8x128xf32>
      %c0_33 = arith.constant 0 : index
      %c0_34 = arith.constant 0 : index
      %42 = vector.load %arg11[%c0_33, %c0_34] : memref<1x128xf32, #tpu.memory_space<vmem>>, vector<1x128xf32>
      %43 = vector.broadcast %42 : vector<1x128xf32> to vector<8x128xf32>
      %44 = arith.addf %41, %43 : vector<8x128xf32>
      %cst_35 = arith.constant 0.000000e+00 : f32
      %45 = vector.broadcast %cst_35 : f32 to vector<8x128xf32>
      %46 = arith.maximumf %44, %45 : vector<8x128xf32>
      %c0_36 = arith.constant 0 : index
      %c0_37 = arith.constant 0 : index
      %47 = vector.load %arg12[%c0_36, %c0_37] : memref<128x128xf32, #tpu.memory_space<vmem>>, vector<128x128xf32>
      %cst_38 = arith.constant dense<0.000000e+00> : vector<8x128xf32>
      %48 = tpu.matmul %46, %47, %cst_38 {dimension_numbers = #tpu.dot_dimension_numbers<[1], [0], [0], [1], [0, 0, 1, 1], [], []>} : vector<8x128xf32>, vector<128x128xf32>, vector<8x128xf32> -> vector<8x128xf32>
      %c0_39 = arith.constant 0 : index
      %c0_40 = arith.constant 0 : index
      %49 = vector.load %arg13[%c0_39, %c0_40] : memref<1x128xf32, #tpu.memory_space<vmem>>, vector<1x128xf32>
      %50 = vector.broadcast %49 : vector<1x128xf32> to vector<8x128xf32>
      %51 = arith.addf %48, %50 : vector<8x128xf32>
      %c0_41 = arith.constant 0 : index
      %c0_42 = arith.constant 0 : index
      %52 = vector.load %arg14[%c0_41, %c0_42] : memref<8x128xf32, #tpu.memory_space<vmem>>, vector<8x128xf32>
      tpu.vector_store %arg14[%c0_41, %c0_42], %51 {strides = array<i32>} : memref<8x128xf32, #tpu.memory_space<vmem>>, vector<8x128xf32>,
    } else {
    }
    return
  }
  func.func @transform_0(%arg0: i32) -> (i32, i32) {
    %c0_i32 = arith.constant 0 : i32
    %c0_i32_0 = arith.constant 0 : i32
    %c0_i32_1 = arith.constant 0 : i32
    return %c0_i32, %c0_i32_0 : i32, i32
  }
  func.func @transform_1(%arg0: i32) -> (i32, i32, i32) {
    %c0_i32 = arith.constant 0 : i32
    %c0_i32_0 = arith.constant 0 : i32
    %c0_i32_1 = arith.constant 0 : i32
    return %arg0, %c0_i32, %c0_i32_0 : i32, i32, i32
  }
  func.func @transform_2(%arg0: i32) -> (i32, i32, i32) {
    %c0_i32 = arith.constant 0 : i32
    %c0_i32_0 = arith.constant 0 : i32
    %c0_i32_1 = arith.constant 0 : i32
    return %arg0, %c0_i32, %c0_i32_0 : i32, i32, i32
  }
  func.func @transform_3(%arg0: i32) -> (i32, i32) {
    %c0_i32 = arith.constant 0 : i32
    %c0_i32_0 = arith.constant 0 : i32
    %c0_i32_1 = arith.constant 0 : i32
    return %c0_i32, %c0_i32_0 : i32, i32
  }
  func.func @transform_4(%arg0: i32) -> (i32, i32) {
    %c0_i32 = arith.constant 0 : i32
    %c0_i32_0 = arith.constant 0 : i32
    %c0_i32_1 = arith.constant 0 : i32
    return %c0_i32, %c0_i32_0 : i32, i32
  }
  func.func @transform_5(%arg0: i32) -> (i32, i32) {
    %c0_i32 = arith.constant 0 : i32
    %c0_i32_0 = arith.constant 0 : i32
    %c0_i32_1 = arith.constant 0 : i32
    return %c0_i32, %c0_i32_0 : i32, i32
  }
  func.func @transform_6(%arg0: i32) -> (i32, i32) {
    %c0_i32 = arith.constant 0 : i32
    %c0_i32_0 = arith.constant 0 : i32
    %c0_i32_1 = arith.constant 0 : i32
    return %c0_i32, %c0_i32_0 : i32, i32
  }
  func.func @transform_7(%arg0: i32) -> (i32, i32) {
    %c0_i32 = arith.constant 0 : i32
    %c0_i32_0 = arith.constant 0 : i32
    %c0_i32_1 = arith.constant 0 : i32
    return %c0_i32, %c0_i32_0 : i32, i32
  }
  func.func @transform_8(%arg0: i32) -> (i32, i32) {
    %c0_i32 = arith.constant 0 : i32
    %c0_i32_0 = arith.constant 0 : i32
    %c0_i32_1 = arith.constant 0 : i32
    return %c0_i32, %c0_i32_0 : i32, i32
  }
  func.func @transform_9(%arg0: i32) -> (i32, i32) {
    %c0_i32 = arith.constant 0 : i32
    %c0_i32_0 = arith.constant 0 : i32
    %c0_i32_1 = arith.constant 0 : i32
    return %c0_i32, %c0_i32_0 : i32, i32
  }
  func.func @transform_10(%arg0: i32) -> (i32, i32) {
    %c0_i32 = arith.constant 0 : i32
    %c0_i32_0 = arith.constant 0 : i32
    %c0_i32_1 = arith.constant 0 : i32
    return %c0_i32, %c0_i32_0 : i32, i32
  }
  func.func @transform_11(%arg0: i32) -> (i32, i32) {
    %c0_i32 = arith.constant 0 : i32
    %c0_i32_0 = arith.constant 0 : i32
    %c0_i32_1 = arith.constant 0 : i32
    return %c0_i32, %c0_i32_0 : i32, i32
  }
  func.func @transform_12(%arg0: i32) -> (i32, i32) {
    %c0_i32 = arith.constant 0 : i32
    %c0_i32_0 = arith.constant 0 : i32
    %c0_i32_1 = arith.constant 0 : i32
    return %c0_i32, %c0_i32_0 : i32, i32
  }
  func.func @transform_13(%arg0: i32) -> (i32, i32) {
    %c0_i32 = arith.constant 0 : i32
    %c0_i32_0 = arith.constant 0 : i32
    %c0_i32_1 = arith.constant 0 : i32
    return %c0_i32, %c0_i32_0 : i32, i32
  }
}

</mosaic_0001>

<llo_original>
// kernel: tpu_custom_call.1
$region0: #{tpu_custom_call.1}
  #allocation0 [shape = 'u32[]', space=smem, size = 0x4, offset = 0x4, fixed_abs, tag = 'smem constant byte address 0x4 - core index']
  #allocation1 [shape = 'u32[72,128]{1,0:T(1,128)}', space=vmem, size = 0x9000, scoped, tag = 'internal scratch']
  #allocation2 [shape = 'f32[8,128]{1,0:T(8,128)}', space=vmem, size = 0x1000, scoped, tag = 'scratch operand']
  #allocation3 [shape = 'f32[8,128]{1,0:T(8,128)}', space=vmem, size = 0x1000, scoped, tag = 'scratch operand']
  #allocation4 [shape = 'f32[8,128]{1,0:T(8,128)}', space=vmem, size = 0x1000, scoped, tag = 'scratch operand']
  %s0 = inlined_call_operand.hbm [shape: f32[8,128], index: 0, kind: input, shape index: {}]
  %s1 = inlined_call_operand.hbm [shape: s32[2,1,128], index: 1, kind: input, shape index: {}]
  %s2 = inlined_call_operand.hbm [shape: s32[2,1,128], index: 2, kind: input, shape index: {}]
  %s3 = inlined_call_operand.hbm [shape: f32[128,128], index: 3, kind: input, shape index: {}]
  %s4 = inlined_call_operand.hbm [shape: f32[128,128], index: 4, kind: input, shape index: {}]
  %s5 = inlined_call_operand.vmem [shape: f32[1,128], index: 5, kind: input, shape index: {}]
  %s6 = inlined_call_operand.hbm [shape: f32[128,128], index: 6, kind: input, shape index: {}]
  %s7 = inlined_call_operand.vmem [shape: f32[1,128], index: 7, kind: input, shape index: {}]
  %s8 = inlined_call_operand.hbm [shape: f32[128,128], index: 8, kind: input, shape index: {}]
  %s9 = inlined_call_operand.hbm [shape: f32[128,128], index: 9, kind: input, shape index: {}]
  %s10 = inlined_call_operand.vmem [shape: f32[1,128], index: 10, kind: input, shape index: {}]
  %s11 = inlined_call_operand.hbm [shape: f32[128,128], index: 11, kind: input, shape index: {}]
  %s12 = inlined_call_operand.vmem [shape: f32[1,128], index: 12, kind: input, shape index: {}]
  %s13 = inlined_call_operand.hbm [shape: f32[8,128], index: 13, kind: output, shape index: {}]
  %s14 = sld [smem:[#allocation0]]
  $region129: #{tpu_custom_call.1} parent=0
    _
  %s16 = ssub.s32 1, %s14
  %s17 = scalar_select 0, %s16, %s14
  $region1: #{tpu_custom_call.1} parent=0
    #allocation5 [shape = 'u8[4096]{0}', space=vmem, size = 0x1000, scoped, tag = 'input window, operand 0, single buffered']
    #allocation6 [shape = 's32[2]{0}', space=sflag, size = 0x8, scoped, tag = 'scoped memory for tpu_custom_call.1']
    #allocation7 [shape = 's32[2]{0}', space=sflag, size = 0x8, scoped, tag = 'scoped memory for tpu_custom_call.1']
    #allocation8 [shape = 'u8[1024]{0}', space=vmem, size = 0x400, scoped, tag = 'input window, operand 1']
    #allocation9 [shape = 's32[2]{0}', space=sflag, size = 0x8, scoped, tag = 'scoped memory for tpu_custom_call.1']
    #allocation10 [shape = 'u8[1024]{0}', space=vmem, size = 0x400, scoped, tag = 'input window, operand 2']
    #allocation11 [shape = 'u8[65536]{0}', space=vmem, size = 0x10000, scoped, tag = 'input window, operand 3, single buffered']
    #allocation12 [shape = 's32[1]{0}', space=sflag, size = 0x4, scoped, tag = 'scoped memory for tpu_custom_call.1']
    #allocation13 [shape = 'u8[65536]{0}', space=vmem, size = 0x10000, scoped, tag = 'input window, operand 4, single buffered']
    #allocation14 [shape = 'u8[65536]{0}', space=vmem, size = 0x10000, scoped, tag = 'input window, operand 6, single buffered']
    #allocation15 [shape = 's32[1]{0}', space=sflag, size = 0x4, scoped, tag = 'scoped memory for tpu_custom_call.1']
    #allocation16 [shape = 'u8[65536]{0}', space=vmem, size = 0x10000, scoped, tag = 'input window, operand 8, single buffered']
    #allocation17 [shape = 'u8[65536]{0}', space=vmem, size = 0x10000, scoped, tag = 'input window, operand 9, single buffered']
    #allocation18 [shape = 's32[1]{0}', space=sflag, size = 0x4, scoped, tag = 'scoped memory for tpu_custom_call.1']
    #allocation19 [shape = 'u8[65536]{0}', space=vmem, size = 0x10000, scoped, tag = 'input window, operand 11, single buffered']
    #allocation20 [shape = 'u8[4096]{0}', space=vmem, size = 0x1000, scoped, tag = 'output window, operand 0, single buffered']
    %18 = vsyncpa [#allocation6], 0
    %19 = vsyncpa [#allocation9], 0
    %s20 = scalar_lea.sflag [#allocation9], 1
    %21 = vsyncpa %s20, 0
    %22 = vsyncpa [#allocation12], 0
    %23 = vsyncpa [#allocation15], 0
    %24 = vsyncpa [#allocation18], 0
    %25 = vsyncpa [#allocation7], 0
    loop: start=0, step=1, limit=4
    $region2: #{tpu_custom_call.1} parent=1 // loop_pre_header
      _
    $region3: #{tpu_custom_call.1} parent=1 // loop_header
      %s27 = sphi 0, %s31
      %p28 = scmp.ge.s32.totalorder %s27, 4
      %s35 = sphi 0, %s35
      %s37 = sphi 0, %s35
      %s38 = sphi 0, %s37
      %s52 = sphi 0, %s38
      %s58 = sphi 0, %s60
      %s61 = sphi 0, %s58
      %s62 = sphi 0, %s61
      %s78 = sphi 0, %s62
      %s84 = sphi 0, %s86
      %s87 = sphi 0, %s84
      %s88 = sphi 0, %s87
      %s104 = sphi 0, %s88
      %s108 = sphi 0, %s108
      %s110 = sphi 0, %s108
      %s111 = sphi 0, %s110
      %s125 = sphi 0, %s111
      %s129 = sphi 0, %s129
      %s131 = sphi 0, %s129
      %s132 = sphi 0, %s131
      %s146 = sphi 0, %s132
      %s150 = sphi 0, %s150
      %s152 = sphi 0, %s150
      %s153 = sphi 0, %s152
      %s167 = sphi 0, %s153
      %s171 = sphi 0, %s171
      %s173 = sphi 0, %s171
      %s174 = sphi 0, %s173
      %s188 = sphi 0, %s174
      %s192 = sphi 0, %s192
      %s194 = sphi 0, %s192
      %s195 = sphi 0, %s194
      %s209 = sphi 0, %s195
      %s213 = sphi 0, %s213
      %s215 = sphi 0, %s213
      %s216 = sphi 0, %s215
      %s230 = sphi 0, %s216
      %s234 = sphi 0, %s234
      %s236 = sphi 0, %s234
      %s237 = sphi 0, %s236
      %s251 = sphi 0, %s237
      %s255 = sphi 0, %s255
      %s257 = sphi 0, %s255
      %s258 = sphi 0, %s257
      %s272 = sphi 0, %s258
      %s276 = sphi 0, %s276
      %s278 = sphi 0, %s276
      %s279 = sphi 0, %s278
      %s293 = sphi 0, %s279
      %s297 = sphi 0, %s297
      %s299 = sphi 0, %s297
      %s300 = sphi 0, %s299
      %s314 = sphi 0, %s300
      %s318 = sphi 0, %s318
      %s320 = sphi 0, %s318
      %s321 = sphi 0, %s320
      %s335 = sphi 0, %s321
    $region4: #{tpu_custom_call.1} parent=1 // loop_header_branch
      %30 = sbr.rel (%p28) target = $region8
    $region5: #{tpu_custom_call.1} parent=1 // loop_body
      %s32 = ssub.s32 %s27, 1
      %s33 = ssub.s32 %s27, 2
      %s34 = sadd.s32 %s27, 1
      %s36 = sadd.s32 %s35, 1
      %p39 = scmp.eq.s32.totalorder %s27, 1
      %p40 = scmp.ne.s32.totalorder %s35, %s37
      %p41 = scmp.eq.s32.totalorder %s27, 0
      %p42 = por %p40, %p41
      %p43 = scmp.ne.s32.totalorder %s35, %s37
      %p44 = scmp.eq.s32.totalorder %s32, 1
      %p45 = por %p43, %p44
      %p46 = scmp.ne.s32.totalorder %s37, %s38
      %p47 = scmp.eq.s32.totalorder %s32, 0
      %p48 = por %p46, %p47
      %p49 = scmp.ne.s32.totalorder %s37, %s38
      %p50 = scmp.eq.s32.totalorder %s33, 1
      %p51 = por %p49, %p50
      %p53 = scmp.ne.s32.totalorder %s38, %s52
      %p54 = scmp.eq.s32.totalorder %s33, 0
      %p55 = por %p53, %p54
      %s56 = ssub.s32 %s27, %s34
      %p57 = scmp.eq.s32.totalorder %s56, 0
      %s59 = sadd.s32 %s58, 1
      %s60 = scalar_select %p57, %s58, %s59
      %p63 = pneg %p57
      %p64 = scmp.eq.s32.totalorder %s27, 1
      %p65 = por %p63, %p64
      %p66 = scmp.ne.s32.totalorder %s58, %s61
      %p67 = scmp.eq.s32.totalorder %s27, 0
      %p68 = por %p66, %p67
      %p69 = scmp.ne.s32.totalorder %s58, %s61
      %p70 = scmp.eq.s32.totalorder %s32, 1
      %p71 = por %p69, %p70
      %p72 = scmp.ne.s32.totalorder %s61, %s62
      %p73 = scmp.eq.s32.totalorder %s32, 0
      %p74 = por %p72, %p73
      %p75 = scmp.ne.s32.totalorder %s61, %s62
      %p76 = scmp.eq.s32.totalorder %s33, 1
      %p77 = por %p75, %p76
      %p79 = scmp.ne.s32.totalorder %s62, %s78
      %p80 = scmp.eq.s32.totalorder %s33, 0
      %p81 = por %p79, %p80
      %s82 = ssub.s32 %s27, %s34
      %p83 = scmp.eq.s32.totalorder %s82, 0
      %s85 = sadd.s32 %s84, 1
      %s86 = scalar_select %p83, %s84, %s85
      %p89 = pneg %p83
      %p90 = scmp.eq.s32.totalorder %s27, 1
      %p91 = por %p89, %p90
      %p92 = scmp.ne.s32.totalorder %s84, %s87
      %p93 = scmp.eq.s32.totalorder %s27, 0
      %p94 = por %p92, %p93
      %p95 = scmp.ne.s32.totalorder %s84, %s87
      %p96 = scmp.eq.s32.totalorder %s32, 1
      %p97 = por %p95, %p96
      %p98 = scmp.ne.s32.totalorder %s87, %s88
      %p99 = scmp.eq.s32.totalorder %s32, 0
      %p100 = por %p98, %p99
      %p101 = scmp.ne.s32.totalorder %s87, %s88
      %p102 = scmp.eq.s32.totalorder %s33, 1
      %p103 = por %p101, %p102
      %p105 = scmp.ne.s32.totalorder %s88, %s104
      %p106 = scmp.eq.s32.totalorder %s33, 0
      %p107 = por %p105, %p106
      %s109 = sadd.s32 %s108, 1
      %p112 = scmp.eq.s32.totalorder %s27, 1
      %p113 = scmp.ne.s32.totalorder %s108, %s110
      %p114 = scmp.eq.s32.totalorder %s27, 0
      %p115 = por %p113, %p114
      %p116 = scmp.ne.s32.totalorder %s108, %s110
      %p117 = scmp.eq.s32.totalorder %s32, 1
      %p118 = por %p116, %p117
      %p119 = scmp.ne.s32.totalorder %s110, %s111
      %p120 = scmp.eq.s32.totalorder %s32, 0
      %p121 = por %p119, %p120
      %p122 = scmp.ne.s32.totalorder %s110, %s111
      %p123 = scmp.eq.s32.totalorder %s33, 1
      %p124 = por %p122, %p123
      %p126 = scmp.ne.s32.totalorder %s111, %s125
      %p127 = scmp.eq.s32.totalorder %s33, 0
      %p128 = por %p126, %p127
      %s130 = sadd.s32 %s129, 1
      %p133 = scmp.eq.s32.totalorder %s27, 1
      %p134 = scmp.ne.s32.totalorder %s129, %s131
      %p135 = scmp.eq.s32.totalorder %s27, 0
      %p136 = por %p134, %p135
      %p137 = scmp.ne.s32.totalorder %s129, %s131
      %p138 = scmp.eq.s32.totalorder %s32, 1
      %p139 = por %p137, %p138
      %p140 = scmp.ne.s32.totalorder %s131, %s132
      %p141 = scmp.eq.s32.totalorder %s32, 0
      %p142 = por %p140, %p141
      %p143 = scmp.ne.s32.totalorder %s131, %s132
      %p144 = scmp.eq.s32.totalorder %s33, 1
      %p145 = por %p143, %p144
      %p147 = scmp.ne.s32.totalorder %s132, %s146
      %p148 = scmp.eq.s32.totalorder %s33, 0
      %p149 = por %p147, %p148
      %s151 = sadd.s32 %s150, 1
      %p154 = scmp.eq.s32.totalorder %s27, 1
      %p155 = scmp.ne.s32.totalorder %s150, %s152
      %p156 = scmp.eq.s32.totalorder %s27, 0
      %p157 = por %p155, %p156
      %p158 = scmp.ne.s32.totalorder %s150, %s152
      %p159 = scmp.eq.s32.totalorder %s32, 1
      %p160 = por %p158, %p159
      %p161 = scmp.ne.s32.totalorder %s152, %s153
      %p162 = scmp.eq.s32.totalorder %s32, 0
      %p163 = por %p161, %p162
      %p164 = scmp.ne.s32.totalorder %s152, %s153
      %p165 = scmp.eq.s32.totalorder %s33, 1
      %p166 = por %p164, %p165
      %p168 = scmp.ne.s32.totalorder %s153, %s167
      %p169 = scmp.eq.s32.totalorder %s33, 0
      %p170 = por %p168, %p169
      %s172 = sadd.s32 %s171, 1
      %p175 = scmp.eq.s32.totalorder %s27, 1
      %p176 = scmp.ne.s32.totalorder %s171, %s173
      %p177 = scmp.eq.s32.totalorder %s27, 0
      %p178 = por %p176, %p177
      %p179 = scmp.ne.s32.totalorder %s171, %s173
      %p180 = scmp.eq.s32.totalorder %s32, 1
      %p181 = por %p179, %p180
      %p182 = scmp.ne.s32.totalorder %s173, %s174
      %p183 = scmp.eq.s32.totalorder %s32, 0
      %p184 = por %p182, %p183
      %p185 = scmp.ne.s32.totalorder %s173, %s174
      %p186 = scmp.eq.s32.totalorder %s33, 1
      %p187 = por %p185, %p186
      %p189 = scmp.ne.s32.totalorder %s174, %s188
      %p190 = scmp.eq.s32.totalorder %s33, 0
      %p191 = por %p189, %p190
      %s193 = sadd.s32 %s192, 1
      %p196 = scmp.eq.s32.totalorder %s27, 1
      %p197 = scmp.ne.s32.totalorder %s192, %s194
      %p198 = scmp.eq.s32.totalorder %s27, 0
      %p199 = por %p197, %p198
      %p200 = scmp.ne.s32.totalorder %s192, %s194
      %p201 = scmp.eq.s32.totalorder %s32, 1
      %p202 = por %p200, %p201
      %p203 = scmp.ne.s32.totalorder %s194, %s195
      %p204 = scmp.eq.s32.totalorder %s32, 0
      %p205 = por %p203, %p204
      %p206 = scmp.ne.s32.totalorder %s194, %s195
      %p207 = scmp.eq.s32.totalorder %s33, 1
      %p208 = por %p206, %p207
      %p210 = scmp.ne.s32.totalorder %s195, %s209
      %p211 = scmp.eq.s32.totalorder %s33, 0
      %p212 = por %p210, %p211
      %s214 = sadd.s32 %s213, 1
      %p217 = scmp.eq.s32.totalorder %s27, 1
      %p218 = scmp.ne.s32.totalorder %s213, %s215
      %p219 = scmp.eq.s32.totalorder %s27, 0
      %p220 = por %p218, %p219
      %p221 = scmp.ne.s32.totalorder %s213, %s215
      %p222 = scmp.eq.s32.totalorder %s32, 1
      %p223 = por %p221, %p222
      %p224 = scmp.ne.s32.totalorder %s215, %s216
      %p225 = scmp.eq.s32.totalorder %s32, 0
      %p226 = por %p224, %p225
      %p227 = scmp.ne.s32.totalorder %s215, %s216
      %p228 = scmp.eq.s32.totalorder %s33, 1
      %p229 = por %p227, %p228
      %p231 = scmp.ne.s32.totalorder %s216, %s230
      %p232 = scmp.eq.s32.totalorder %s33, 0
      %p233 = por %p231, %p232
      %s235 = sadd.s32 %s234, 1
      %p238 = scmp.eq.s32.totalorder %s27, 1
      %p239 = scmp.ne.s32.totalorder %s234, %s236
      %p240 = scmp.eq.s32.totalorder %s27, 0
      %p241 = por %p239, %p240
      %p242 = scmp.ne.s32.totalorder %s234, %s236
      %p243 = scmp.eq.s32.totalorder %s32, 1
      %p244 = por %p242, %p243
      %p245 = scmp.ne.s32.totalorder %s236, %s237
      %p246 = scmp.eq.s32.totalorder %s32, 0
      %p247 = por %p245, %p246
      %p248 = scmp.ne.s32.totalorder %s236, %s237
      %p249 = scmp.eq.s32.totalorder %s33, 1
      %p250 = por %p248, %p249
      %p252 = scmp.ne.s32.totalorder %s237, %s251
      %p253 = scmp.eq.s32.totalorder %s33, 0
      %p254 = por %p252, %p253
      %s256 = sadd.s32 %s255, 1
      %p259 = scmp.eq.s32.totalorder %s27, 1
      %p260 = scmp.ne.s32.totalorder %s255, %s257
      %p261 = scmp.eq.s32.totalorder %s27, 0
      %p262 = por %p260, %p261
      %p263 = scmp.ne.s32.totalorder %s255, %s257
      %p264 = scmp.eq.s32.totalorder %s32, 1
      %p265 = por %p263, %p264
      %p266 = scmp.ne.s32.totalorder %s257, %s258
      %p267 = scmp.eq.s32.totalorder %s32, 0
      %p268 = por %p266, %p267
      %p269 = scmp.ne.s32.totalorder %s257, %s258
      %p270 = scmp.eq.s32.totalorder %s33, 1
      %p271 = por %p269, %p270
      %p273 = scmp.ne.s32.totalorder %s258, %s272
      %p274 = scmp.eq.s32.totalorder %s33, 0
      %p275 = por %p273, %p274
      %s277 = sadd.s32 %s276, 1
      %p280 = scmp.eq.s32.totalorder %s27, 1
      %p281 = scmp.ne.s32.totalorder %s276, %s278
      %p282 = scmp.eq.s32.totalorder %s27, 0
      %p283 = por %p281, %p282
      %p284 = scmp.ne.s32.totalorder %s276, %s278
      %p285 = scmp.eq.s32.totalorder %s32, 1
      %p286 = por %p284, %p285
      %p287 = scmp.ne.s32.totalorder %s278, %s279
      %p288 = scmp.eq.s32.totalorder %s32, 0
      %p289 = por %p287, %p288
      %p290 = scmp.ne.s32.totalorder %s278, %s279
      %p291 = scmp.eq.s32.totalorder %s33, 1
      %p292 = por %p290, %p291
      %p294 = scmp.ne.s32.totalorder %s279, %s293
      %p295 = scmp.eq.s32.totalorder %s33, 0
      %p296 = por %p294, %p295
      %s298 = sadd.s32 %s297, 1
      %p301 = scmp.eq.s32.totalorder %s27, 1
      %p302 = scmp.ne.s32.totalorder %s297, %s299
      %p303 = scmp.eq.s32.totalorder %s27, 0
      %p304 = por %p302, %p303
      %p305 = scmp.ne.s32.totalorder %s297, %s299
      %p306 = scmp.eq.s32.totalorder %s32, 1
      %p307 = por %p305, %p306
      %p308 = scmp.ne.s32.totalorder %s299, %s300
      %p309 = scmp.eq.s32.totalorder %s32, 0
      %p310 = por %p308, %p309
      %p311 = scmp.ne.s32.totalorder %s299, %s300
      %p312 = scmp.eq.s32.totalorder %s33, 1
      %p313 = por %p311, %p312
      %p315 = scmp.ne.s32.totalorder %s300, %s314
      %p316 = scmp.eq.s32.totalorder %s33, 0
      %p317 = por %p315, %p316
      %s319 = sadd.s32 %s318, 1
      %p322 = scmp.eq.s32.totalorder %s27, 1
      %p323 = scmp.ne.s32.totalorder %s318, %s320
      %p324 = scmp.eq.s32.totalorder %s27, 0
      %p325 = por %p323, %p324
      %p326 = scmp.ne.s32.totalorder %s318, %s320
      %p327 = scmp.eq.s32.totalorder %s32, 1
      %p328 = por %p326, %p327
      %p329 = scmp.ne.s32.totalorder %s320, %s321
      %p330 = scmp.eq.s32.totalorder %s32, 0
      %p331 = por %p329, %p330
      %p332 = scmp.ne.s32.totalorder %s320, %s321
      %p333 = scmp.eq.s32.totalorder %s33, 1
      %p334 = por %p332, %p333
      %p336 = scmp.ne.s32.totalorder %s321, %s335
      %p337 = scmp.eq.s32.totalorder %s33, 0
      %p338 = por %p336, %p337
      %p339 = scmp.le.s32.totalorder 1, %s27
      %p340 = scmp.lt.s32.totalorder %s27, 3
      %p341 = pnand %p339, %p340
      %p342 = pneg %p341
      // Predicated region
      $region9: #{tpu_custom_call.1} parent=5 // pred_check
        _
      $region10: #{tpu_custom_call.1} parent=5 // pred_check_branch
        %344 = sbr.rel (%p341) target = $region12
      $region11: #{tpu_custom_call.1} parent=5 // pred_region
        %s345 = ssub.s32 %s27, 1
        // Predicated region
        $region13: #{tpu_custom_call.1} parent=11 // pred_check
          %p346 = pneg %p48
        $region14: #{tpu_custom_call.1} parent=11 // pred_check_branch
          %348 = sbr.rel (%p346) target = $region16
        $region15: #{tpu_custom_call.1} parent=11 // pred_region
          %350 = vsyncadd [#allocation6], 0
          %s352 = sshll.u32 %s0, 4
          %s353 = int_to_ptr.hbm [resolvable:$true] %s352
          %s354 = sshll.u32 [#allocation5], 4
          %s355 = int_to_ptr.vmem [resolvable:$true] %s354
          %357 = dma.hbm_to_vmem [thread:$0]  %s353, 128, %s355, [#allocation6]
        $region16: #{tpu_custom_call.1} parent=11 // pred_fallthru
          _
        // Predicated region
        $region17: #{tpu_custom_call.1} parent=11 // pred_check
          %p358 = pneg %p121
        $region18: #{tpu_custom_call.1} parent=11 // pred_check_branch
          %360 = sbr.rel (%p358) target = $region20
        $region19: #{tpu_custom_call.1} parent=11 // pred_region
          %362 = vsyncadd [#allocation12], 0
          %s363 = sshll.u32 %s3, 4
          %s364 = int_to_ptr.hbm [resolvable:$true] %s363
          %s365 = sshll.u32 [#allocation11], 4
          %s366 = int_to_ptr.vmem [resolvable:$true] %s365
          %371 = dma.hbm_to_vmem [thread:$0]  %s364, 2048, %s366, [#allocation12], 128, 128, 8
        $region20: #{tpu_custom_call.1} parent=11 // pred_fallthru
          _
        // Predicated region
        $region21: #{tpu_custom_call.1} parent=11 // pred_check
          %p372 = pneg %p142
        $region22: #{tpu_custom_call.1} parent=11 // pred_check_branch
          %374 = sbr.rel (%p372) target = $region24
        $region23: #{tpu_custom_call.1} parent=11 // pred_region
          %376 = vsyncadd [#allocation12], 0
          %s377 = sshll.u32 %s4, 4
          %s378 = int_to_ptr.hbm [resolvable:$true] %s377
          %s379 = sshll.u32 [#allocation13], 4
          %s380 = int_to_ptr.vmem [resolvable:$true] %s379
          %385 = dma.hbm_to_vmem [thread:$0]  %s378, 2048, %s380, [#allocation12], 128, 128, 8
        $region24: #{tpu_custom_call.1} parent=11 // pred_fallthru
          _
        // Predicated region
        $region25: #{tpu_custom_call.1} parent=11 // pred_check
          %p386 = pneg %p163
        $region26: #{tpu_custom_call.1} parent=11 // pred_check_branch
          %388 = sbr.rel (%p386) target = $region28
        $region27: #{tpu_custom_call.1} parent=11 // pred_region
          _
        $region28: #{tpu_custom_call.1} parent=11 // pred_fallthru
          _
        // Predicated region
        $region29: #{tpu_custom_call.1} parent=11 // pred_check
          %p389 = pneg %p184
        $region30: #{tpu_custom_call.1} parent=11 // pred_check_branch
          %391 = sbr.rel (%p389) target = $region32
        $region31: #{tpu_custom_call.1} parent=11 // pred_region
          %393 = vsyncadd [#allocation15], 0
          %s394 = sshll.u32 %s6, 4
          %s395 = int_to_ptr.hbm [resolvable:$true] %s394
          %s396 = sshll.u32 [#allocation14], 4
          %s397 = int_to_ptr.vmem [resolvable:$true] %s396
          %402 = dma.hbm_to_vmem [thread:$0]  %s395, 2048, %s397, [#allocation15], 128, 128, 8
        $region32: #{tpu_custom_call.1} parent=11 // pred_fallthru
          _
        // Predicated region
        $region33: #{tpu_custom_call.1} parent=11 // pred_check
          %p403 = pneg %p205
        $region34: #{tpu_custom_call.1} parent=11 // pred_check_branch
          %405 = sbr.rel (%p403) target = $region36
        $region35: #{tpu_custom_call.1} parent=11 // pred_region
          _
        $region36: #{tpu_custom_call.1} parent=11 // pred_fallthru
          _
        // Predicated region
        $region37: #{tpu_custom_call.1} parent=11 // pred_check
          %p406 = pneg %p226
        $region38: #{tpu_custom_call.1} parent=11 // pred_check_branch
          %408 = sbr.rel (%p406) target = $region40
        $region39: #{tpu_custom_call.1} parent=11 // pred_region
          %410 = vsyncadd [#allocation15], 0
          %s411 = sshll.u32 %s8, 4
          %s412 = int_to_ptr.hbm [resolvable:$true] %s411
          %s413 = sshll.u32 [#allocation16], 4
          %s414 = int_to_ptr.vmem [resolvable:$true] %s413
          %419 = dma.hbm_to_vmem [thread:$0]  %s412, 2048, %s414, [#allocation15], 128, 128, 8
        $region40: #{tpu_custom_call.1} parent=11 // pred_fallthru
          _
        // Predicated region
        $region41: #{tpu_custom_call.1} parent=11 // pred_check
          %p420 = pneg %p247
        $region42: #{tpu_custom_call.1} parent=11 // pred_check_branch
          %422 = sbr.rel (%p420) target = $region44
        $region43: #{tpu_custom_call.1} parent=11 // pred_region
          %424 = vsyncadd [#allocation18], 0
          %s425 = sshll.u32 %s9, 4
          %s426 = int_to_ptr.hbm [resolvable:$true] %s425
          %s427 = sshll.u32 [#allocation17], 4
          %s428 = int_to_ptr.vmem [resolvable:$true] %s427
          %433 = dma.hbm_to_vmem [thread:$0]  %s426, 2048, %s428, [#allocation18], 128, 128, 8
        $region44: #{tpu_custom_call.1} parent=11 // pred_fallthru
          _
        // Predicated region
        $region45: #{tpu_custom_call.1} parent=11 // pred_check
          %p434 = pneg %p268
        $region46: #{tpu_custom_call.1} parent=11 // pred_check_branch
          %436 = sbr.rel (%p434) target = $region48
        $region47: #{tpu_custom_call.1} parent=11 // pred_region
          _
        $region48: #{tpu_custom_call.1} parent=11 // pred_fallthru
          _
        // Predicated region
        $region49: #{tpu_custom_call.1} parent=11 // pred_check
          %p437 = pneg %p289
        $region50: #{tpu_custom_call.1} parent=11 // pred_check_branch
          %439 = sbr.rel (%p437) target = $region52
        $region51: #{tpu_custom_call.1} parent=11 // pred_region
          %441 = vsyncadd [#allocation18], 0
          %s442 = sshll.u32 %s11, 4
          %s443 = int_to_ptr.hbm [resolvable:$true] %s442
          %s444 = sshll.u32 [#allocation19], 4
          %s445 = int_to_ptr.vmem [resolvable:$true] %s444
          %450 = dma.hbm_to_vmem [thread:$0]  %s443, 2048, %s445, [#allocation18], 128, 128, 8
        $region52: #{tpu_custom_call.1} parent=11 // pred_fallthru
          _
        // Predicated region
        $region53: #{tpu_custom_call.1} parent=11 // pred_check
          %p451 = pneg %p310
        $region54: #{tpu_custom_call.1} parent=11 // pred_check_branch
          %453 = sbr.rel (%p451) target = $region56
        $region55: #{tpu_custom_call.1} parent=11 // pred_region
          _
        $region56: #{tpu_custom_call.1} parent=11 // pred_fallthru
          _
      $region12: #{tpu_custom_call.1} parent=5 // pred_fallthru
        _
      %p454 = scmp.lt.s32.totalorder %s27, 2
      // Predicated region
      $region57: #{tpu_custom_call.1} parent=5 // pred_check
        %p455 = pneg %p454
      $region58: #{tpu_custom_call.1} parent=5 // pred_check_branch
        %457 = sbr.rel (%p455) target = $region60
      $region59: #{tpu_custom_call.1} parent=5 // pred_region
        // Predicated region
        $region61: #{tpu_custom_call.1} parent=59 // pred_check
          %p458 = pneg %p68
        $region62: #{tpu_custom_call.1} parent=59 // pred_check_branch
          %460 = sbr.rel (%p458) target = $region64
        $region63: #{tpu_custom_call.1} parent=59 // pred_region
          %s461 = sand.u32 %s27, 1
          %s462 = scalar_lea.sflag [#allocation9], %s461
          %s463 = sand.u32 %s58, 1
          %s464 = scalar_lea.vmem [#allocation8], %s463
          %466 = vsyncadd %s462, 0
          %s467 = scalar_lea.hbm %s1, %s27
          %s469 = sshll.u32 %s467, 4
          %s470 = int_to_ptr.hbm [resolvable:$true] %s469
          %s471 = sshll.u32 %s464, 4
          %s472 = int_to_ptr.vmem [resolvable:$true] %s471
          %474 = dma.hbm_to_vmem [thread:$0]  %s470, 16, %s472, %s462
        $region64: #{tpu_custom_call.1} parent=59 // pred_fallthru
          _
        // Predicated region
        $region65: #{tpu_custom_call.1} parent=59 // pred_check
          %p475 = pneg %p94
        $region66: #{tpu_custom_call.1} parent=59 // pred_check_branch
          %477 = sbr.rel (%p475) target = $region68
        $region67: #{tpu_custom_call.1} parent=59 // pred_region
          %s478 = sand.u32 %s27, 1
          %s479 = scalar_lea.sflag [#allocation9], %s478
          %s480 = sand.u32 %s84, 1
          %s481 = scalar_lea.vmem [#allocation10], %s480
          %483 = vsyncadd %s479, 0
          %s484 = scalar_lea.hbm %s2, %s27
          %s486 = sshll.u32 %s484, 4
          %s487 = int_to_ptr.hbm [resolvable:$true] %s486
          %s488 = sshll.u32 %s481, 4
          %s489 = int_to_ptr.vmem [resolvable:$true] %s488
          %491 = dma.hbm_to_vmem [thread:$0]  %s487, 16, %s489, %s479
        $region68: #{tpu_custom_call.1} parent=59 // pred_fallthru
          _
      $region60: #{tpu_custom_call.1} parent=5 // pred_fallthru
        _
      %p492 = scmp.le.s32.totalorder 1, %s27
      %p493 = scmp.lt.s32.totalorder %s27, 3
      %p494 = pnand %p492, %p493
      %p495 = pneg %p494
      // Predicated region
      $region69: #{tpu_custom_call.1} parent=5 // pred_check
        _
      $region70: #{tpu_custom_call.1} parent=5 // pred_check_branch
        %497 = sbr.rel (%p494) target = $region72
      $region71: #{tpu_custom_call.1} parent=5 // pred_region
        %s498 = ssub.s32 %s27, 1
        // Predicated region
        $region73: #{tpu_custom_call.1} parent=71 // pred_check
          %p499 = pneg %p48
        $region74: #{tpu_custom_call.1} parent=71 // pred_check_branch
          %501 = sbr.rel (%p499) target = $region76
        $region75: #{tpu_custom_call.1} parent=71 // pred_region
          %503 = dma.done [#allocation6], 128
        $region76: #{tpu_custom_call.1} parent=71 // pred_fallthru
          _
        %s504 = sand.u32 %s32, 1
        %s505 = scalar_lea.sflag [#allocation9], %s504
        %s506 = sand.u32 %s61, 1
        %s507 = scalar_lea.vmem [#allocation8], %s506
        // Predicated region
        $region77: #{tpu_custom_call.1} parent=71 // pred_check
          %p508 = pneg %p74
        $region78: #{tpu_custom_call.1} parent=71 // pred_check_branch
          %510 = sbr.rel (%p508) target = $region80
        $region79: #{tpu_custom_call.1} parent=71 // pred_region
          %512 = dma.done %s505, 16
        $region80: #{tpu_custom_call.1} parent=71 // pred_fallthru
          _
        %s513 = sand.u32 %s32, 1
        %s514 = scalar_lea.sflag [#allocation9], %s513
        %s515 = sand.u32 %s87, 1
        %s516 = scalar_lea.vmem [#allocation10], %s515
        // Predicated region
        $region81: #{tpu_custom_call.1} parent=71 // pred_check
          %p517 = pneg %p100
        $region82: #{tpu_custom_call.1} parent=71 // pred_check_branch
          %519 = sbr.rel (%p517) target = $region84
        $region83: #{tpu_custom_call.1} parent=71 // pred_region
          %521 = dma.done %s514, 16
        $region84: #{tpu_custom_call.1} parent=71 // pred_fallthru
          _
        // Predicated region
        $region85: #{tpu_custom_call.1} parent=71 // pred_check
          %p522 = pneg %p121
        $region86: #{tpu_custom_call.1} parent=71 // pred_check_branch
          %524 = sbr.rel (%p522) target = $region88
        $region87: #{tpu_custom_call.1} parent=71 // pred_region
          %526 = dma.done [#allocation12], 2048
        $region88: #{tpu_custom_call.1} parent=71 // pred_fallthru
          _
        // Predicated region
        $region89: #{tpu_custom_call.1} parent=71 // pred_check
          %p527 = pneg %p142
        $region90: #{tpu_custom_call.1} parent=71 // pred_check_branch
          %529 = sbr.rel (%p527) target = $region92
        $region91: #{tpu_custom_call.1} parent=71 // pred_region
          %531 = dma.done [#allocation12], 2048
        $region92: #{tpu_custom_call.1} parent=71 // pred_fallthru
          _
        // Predicated region
        $region93: #{tpu_custom_call.1} parent=71 // pred_check
          %p532 = pneg %p184
        $region94: #{tpu_custom_call.1} parent=71 // pred_check_branch
          %534 = sbr.rel (%p532) target = $region96
        $region95: #{tpu_custom_call.1} parent=71 // pred_region
          %536 = dma.done [#allocation15], 2048
        $region96: #{tpu_custom_call.1} parent=71 // pred_fallthru
          _
        // Predicated region
        $region97: #{tpu_custom_call.1} parent=71 // pred_check
          %p537 = pneg %p226
        $region98: #{tpu_custom_call.1} parent=71 // pred_check_branch
          %539 = sbr.rel (%p537) target = $region100
        $region99: #{tpu_custom_call.1} parent=71 // pred_region
          %541 = dma.done [#allocation15], 2048
        $region100: #{tpu_custom_call.1} parent=71 // pred_fallthru
          _
        // Predicated region
        $region101: #{tpu_custom_call.1} parent=71 // pred_check
          %p542 = pneg %p247
        $region102: #{tpu_custom_call.1} parent=71 // pred_check_branch
          %544 = sbr.rel (%p542) target = $region104
        $region103: #{tpu_custom_call.1} parent=71 // pred_region
          %546 = dma.done [#allocation18], 2048
        $region104: #{tpu_custom_call.1} parent=71 // pred_fallthru
          _
        // Predicated region
        $region105: #{tpu_custom_call.1} parent=71 // pred_check
          %p547 = pneg %p289
        $region106: #{tpu_custom_call.1} parent=71 // pred_check_branch
          %549 = sbr.rel (%p547) target = $region108
        $region107: #{tpu_custom_call.1} parent=71 // pred_region
          %551 = dma.done [#allocation18], 2048
        $region108: #{tpu_custom_call.1} parent=71 // pred_fallthru
          _
        %p552 = pneg %p48
        %p553 = pneg %p45
        %s554 = sand.u32 %s32, 1
        %s555 = scalar_lea.sflag [#allocation9], %s554
        %s556 = sand.u32 %s61, 1
        %s557 = scalar_lea.vmem [#allocation8], %s556
        %p558 = pneg %p74
        %p559 = pneg %p71
        %s560 = sand.u32 %s32, 1
        %s561 = scalar_lea.sflag [#allocation9], %s560
        %s562 = sand.u32 %s87, 1
        %s563 = scalar_lea.vmem [#allocation10], %s562
        %p564 = pneg %p100
        %p565 = pneg %p97
        %p566 = pneg %p121
        %p567 = pneg %p118
        %p568 = pneg %p142
        %p569 = pneg %p139
        %p570 = pneg %p163
        %p571 = pneg %p160
        %p572 = pneg %p184
        %p573 = pneg %p181
        %p574 = pneg %p205
        %p575 = pneg %p202
        %p576 = pneg %p226
        %p577 = pneg %p223
        %p578 = pneg %p247
        %p579 = pneg %p244
        %p580 = pneg %p268
        %p581 = pneg %p265
        %p582 = pneg %p289
        %p583 = pneg %p286
        %p584 = pneg %p310
        %p585 = pneg %p307
        %p586 = pneg %p331
        %p587 = pneg %p328
        %p588 = scmp.eq.s32.totalorder %s32, 0
        // Predicated region
        $region109: #{tpu_custom_call.1} parent=71 // pred_check
          %p589 = pneg %p588
        $region110: #{tpu_custom_call.1} parent=71 // pred_check_branch
          %591 = sbr.rel (%p589) target = $region112
        $region111: #{tpu_custom_call.1} parent=71 // pred_region
          %v592 = vld [vmem:[#allocation5] sm:$0xff]
          %v593 = vld [vmem:[#allocation11] sm:$0xff]
          %v594 = vld [vmem:[#allocation11 + $0x8] sm:$0xff]
          %v595 = vld [vmem:[#allocation11 + $0x10] sm:$0xff]
          %v596 = vld [vmem:[#allocation11 + $0x18] sm:$0xff]
          %v597 = vld [vmem:[#allocation11 + $0x20] sm:$0xff]
          %v598 = vld [vmem:[#allocation11 + $0x28] sm:$0xff]
          %v599 = vld [vmem:[#allocation11 + $0x30] sm:$0xff]
          %v600 = vld [vmem:[#allocation11 + $0x38] sm:$0xff]
          %v601 = vld [vmem:[#allocation11 + $0x40] sm:$0xff]
          %v602 = vld [vmem:[#allocation11 + $0x48] sm:$0xff]
          %v603 = vld [vmem:[#allocation11 + $0x50] sm:$0xff]
          %v604 = vld [vmem:[#allocation11 + $0x58] sm:$0xff]
          %v605 = vld [vmem:[#allocation11 + $0x60] sm:$0xff]
          %v606 = vld [vmem:[#allocation11 + $0x68] sm:$0xff]
          %v607 = vld [vmem:[#allocation11 + $0x70] sm:$0xff]
          %v608 = vld [vmem:[#allocation11 + $0x78] sm:$0xff]
          %609 = vmatpush.msra.mxu0 %v608
          %610 = vmatpush.msra.mxu0 %v607
          %611 = vmatpush.msra.mxu0 %v606
          %612 = vmatpush.msra.mxu0 %v605
          %613 = vmatpush.msra.mxu0 %v604
          %614 = vmatpush.msra.mxu0 %v603
          %615 = vmatpush.msra.mxu0 %v602
          %616 = vmatpush.msra.mxu0 %v601
          %617 = vmatpush.msra.mxu0 %v600
          %618 = vmatpush.msra.mxu0 %v599
          %619 = vmatpush.msra.mxu0 %v598
          %620 = vmatpush.msra.mxu0 %v597
          %621 = vmatpush.msra.mxu0 %v596
          %622 = vmatpush.msra.mxu0 %v595
          %623 = vmatpush.msra.mxu0 %v594
          %624 = vmatpush.msra.mxu0 %v593
          %625 = vmatmul.f32.gmra.mxu0 %v592
          %v626 = vpop.f32.mrf.mxu0
          %v627 = vadd.f32 0.0, %v626
          %628 = vdwg.mxu0
          %629 = vst [vmem:[#allocation2] sm:$0xff] %v627
          %v630 = vld [vmem:[#allocation13] sm:$0xff]
          %v631 = vld [vmem:[#allocation13 + $0x8] sm:$0xff]
          %v632 = vld [vmem:[#allocation13 + $0x10] sm:$0xff]
          %v633 = vld [vmem:[#allocation13 + $0x18] sm:$0xff]
          %v634 = vld [vmem:[#allocation13 + $0x20] sm:$0xff]
          %v635 = vld [vmem:[#allocation13 + $0x28] sm:$0xff]
          %v636 = vld [vmem:[#allocation13 + $0x30] sm:$0xff]
          %v637 = vld [vmem:[#allocation13 + $0x38] sm:$0xff]
          %v638 = vld [vmem:[#allocation13 + $0x40] sm:$0xff]
          %v639 = vld [vmem:[#allocation13 + $0x48] sm:$0xff]
          %v640 = vld [vmem:[#allocation13 + $0x50] sm:$0xff]
          %v641 = vld [vmem:[#allocation13 + $0x58] sm:$0xff]
          %v642 = vld [vmem:[#allocation13 + $0x60] sm:$0xff]
          %v643 = vld [vmem:[#allocation13 + $0x68] sm:$0xff]
          %v644 = vld [vmem:[#allocation13 + $0x70] sm:$0xff]
          %v645 = vld [vmem:[#allocation13 + $0x78] sm:$0xff]
          %v646 = vld [vmem:[%s5] sm:$0x1]
          %v648 = vperm.slane %v646, 0
          %650 = vmatpush.msra.mxu0 %v645
          %651 = vmatpush.msra.mxu0 %v644
          %652 = vmatpush.msra.mxu0 %v643
          %653 = vmatpush.msra.mxu0 %v642
          %654 = vmatpush.msra.mxu0 %v641
          %655 = vmatpush.msra.mxu0 %v640
          %656 = vmatpush.msra.mxu0 %v639
          %657 = vmatpush.msra.mxu0 %v638
          %658 = vmatpush.msra.mxu0 %v637
          %659 = vmatpush.msra.mxu0 %v636
          %660 = vmatpush.msra.mxu0 %v635
          %661 = vmatpush.msra.mxu0 %v634
          %662 = vmatpush.msra.mxu0 %v633
          %663 = vmatpush.msra.mxu0 %v632
          %664 = vmatpush.msra.mxu0 %v631
          %665 = vmatpush.msra.mxu0 %v630
          %666 = vmatmul.f32.gmra.mxu0 %v592
          %v667 = vpop.f32.mrf.mxu0
          %v668 = vadd.f32 %v648, %v667
          %669 = vdwg.mxu0
          %670 = vst [vmem:[#allocation3] sm:$0xff] %v668
          %671 = vst [vmem:[#allocation4] sm:$0xff] 0.0
        $region112: #{tpu_custom_call.1} parent=71 // pred_fallthru
          _
        %v672 = vld [vmem:[%s507] sm:$0x1]
        %v673 = vld [vmem:[%s516] sm:$0x1]
        %v674 = vlaneseq
        %v675 = vshrl.u32 %v674, 7
        %v676 = vperm.slane %v672, 0
        %vm677 = vcmp.eq.s32.totalorder %v675, %v676
        %v678 = vsel %vm677, 1, 0
        %v679 = vcvt.s32.f32 %v678
        %v680 = vperm.slane %v673, 0
        %vm681 = vcmp.eq.s32.totalorder %v675, %v680
        %v682 = vsel %vm681, 1, 0
        %v683 = vcvt.s32.f32 %v682
        %v684 = vld [vmem:[#allocation2] sm:$0xff]
        %v685 = vld [vmem:[#allocation3] sm:$0xff]
        %686 = vxpose.xlu0.b32.start [1/16] %v683, 128
        %687 = vxpose.xlu0.b32.cont [2/16] 0.0, 128
        %688 = vxpose.xlu0.b32.cont [3/16] 0.0, 128
        %689 = vxpose.xlu0.b32.cont [4/16] 0.0, 128
        %690 = vxpose.xlu0.b32.cont [5/16] 0.0, 128
        %691 = vxpose.xlu0.b32.cont [6/16] 0.0, 128
        %692 = vxpose.xlu0.b32.cont [7/16] 0.0, 128
        %693 = vxpose.xlu0.b32.cont [8/16] 0.0, 128
        %694 = vxpose.xlu0.b32.cont [9/16] 0.0, 128
        %695 = vxpose.xlu0.b32.cont [10/16] 0.0, 128
        %696 = vxpose.xlu0.b32.cont [11/16] 0.0, 128
        %697 = vxpose.xlu0.b32.cont [12/16] 0.0, 128
        %698 = vxpose.xlu0.b32.cont [13/16] 0.0, 128
        %699 = vxpose.xlu0.b32.cont [14/16] 0.0, 128
        %700 = vxpose.xlu0.b32.cont [15/16] 0.0, 128
        %701 = vxpose.xlu0.b32.end [16/16] 0.0, 128
        %v702 = vpop.trf.xlu0
        %v703 = vpop.trf.xlu0
        %v704 = vpop.trf.xlu0
        %v705 = vpop.trf.xlu0
        %v706 = vpop.trf.xlu0
        %v707 = vpop.trf.xlu0
        %v708 = vpop.trf.xlu0
        %v709 = vpop.trf.xlu0
        %v710 = vpop.trf.xlu0
        %v711 = vpop.trf.xlu0
        %v712 = vpop.trf.xlu0
        %v713 = vpop.trf.xlu0
        %v714 = vpop.trf.xlu0
        %v715 = vpop.trf.xlu0
        %v716 = vpop.trf.xlu0
        %v717 = vpop.trf.xlu0
        %vm718 = vcmask 64512
        %v720 = vsel %vm718, %v702, 0
        %v723 = vsel %vm718, %v703, 0
        %v726 = vsel %vm718, %v704, 0
        %v729 = vsel %vm718, %v705, 0
        %v732 = vsel %vm718, %v706, 0
        %v735 = vsel %vm718, %v707, 0
        %v738 = vsel %vm718, %v708, 0
        %v741 = vsel %vm718, %v709, 0
        %v744 = vsel %vm718, %v710, 0
        %v747 = vsel %vm718, %v711, 0
        %v750 = vsel %vm718, %v712, 0
        %v753 = vsel %vm718, %v713, 0
        %v756 = vsel %vm718, %v714, 0
        %v759 = vsel %vm718, %v715, 0
        %v762 = vsel %vm718, %v716, 0
        %v765 = vsel %vm718, %v717, 0
        %767 = vmatpush.msra.mxu0 0.0
        %768 = vmatpush.msra.mxu0 0.0
        %769 = vmatpush.msra.mxu0 0.0
        %770 = vmatpush.msra.mxu0 0.0
        %771 = vmatpush.msra.mxu0 0.0
        %772 = vmatpush.msra.mxu0 0.0
        %773 = vmatpush.msra.mxu0 0.0
        %774 = vmatpush.msra.mxu0 0.0
        %775 = vmatpush.msra.mxu0 0.0
        %776 = vmatpush.msra.mxu0 0.0
        %777 = vmatpush.msra.mxu0 0.0
        %778 = vmatpush.msra.mxu0 0.0
        %779 = vmatpush.msra.mxu0 0.0
        %780 = vmatpush.msra.mxu0 0.0
        %781 = vmatpush.msra.mxu0 0.0
        %782 = vmatpush.msra.mxu0 %v685
        %783 = vmatmul.f32.gmra.mxu0 %v720
        %v784 = vpop.f32.mrf.mxu0
        %v785 = vadd.f32 0.0, %v784
        %786 = vmatmul.f32.gmra.mxu0 %v723
        %v787 = vpop.f32.mrf.mxu0
        %v788 = vadd.f32 0.0, %v787
        %789 = vmatmul.f32.gmra.mxu0 %v726
        %v790 = vpop.f32.mrf.mxu0
        %v791 = vadd.f32 0.0, %v790
        %792 = vmatmul.f32.gmra.mxu0 %v729
        %v793 = vpop.f32.mrf.mxu0
        %v794 = vadd.f32 0.0, %v793
        %795 = vmatmul.f32.gmra.mxu0 %v732
        %v796 = vpop.f32.mrf.mxu0
        %v797 = vadd.f32 0.0, %v796
        %798 = vmatmul.f32.gmra.mxu0 %v735
        %v799 = vpop.f32.mrf.mxu0
        %v800 = vadd.f32 0.0, %v799
        %801 = vmatmul.f32.gmra.mxu0 %v738
        %v802 = vpop.f32.mrf.mxu0
        %v803 = vadd.f32 0.0, %v802
        %804 = vmatmul.f32.gmra.mxu0 %v741
        %v805 = vpop.f32.mrf.mxu0
        %v806 = vadd.f32 0.0, %v805
        %807 = vmatmul.f32.gmra.mxu0 %v744
        %v808 = vpop.f32.mrf.mxu0
        %v809 = vadd.f32 0.0, %v808
        %810 = vmatmul.f32.gmra.mxu0 %v747
        %v811 = vpop.f32.mrf.mxu0
        %v812 = vadd.f32 0.0, %v811
        %813 = vmatmul.f32.gmra.mxu0 %v750
        %v814 = vpop.f32.mrf.mxu0
        %v815 = vadd.f32 0.0, %v814
        %816 = vmatmul.f32.gmra.mxu0 %v753
        %v817 = vpop.f32.mrf.mxu0
        %v818 = vadd.f32 0.0, %v817
        %819 = vmatmul.f32.gmra.mxu0 %v756
        %v820 = vpop.f32.mrf.mxu0
        %v821 = vadd.f32 0.0, %v820
        %822 = vmatmul.f32.gmra.mxu0 %v759
        %v823 = vpop.f32.mrf.mxu0
        %v824 = vadd.f32 0.0, %v823
        %825 = vmatmul.f32.gmra.mxu0 %v762
        %v826 = vpop.f32.mrf.mxu0
        %v827 = vadd.f32 0.0, %v826
        %828 = vmatmul.f32.gmra.mxu0 %v765
        %v829 = vpop.f32.mrf.mxu0
        %v830 = vadd.f32 0.0, %v829
        %831 = vdwg.mxu0
        %832 = vxpose.xlu0.b32.start [1/16] %v679, 128
        %833 = vxpose.xlu0.b32.cont [2/16] 0.0, 128
        %834 = vxpose.xlu0.b32.cont [3/16] 0.0, 128
        %835 = vxpose.xlu0.b32.cont [4/16] 0.0, 128
        %836 = vxpose.xlu0.b32.cont [5/16] 0.0, 128
        %837 = vxpose.xlu0.b32.cont [6/16] 0.0, 128
        %838 = vxpose.xlu0.b32.cont [7/16] 0.0, 128
        %839 = vxpose.xlu0.b32.cont [8/16] 0.0, 128
        %840 = vxpose.xlu0.b32.cont [9/16] 0.0, 128
        %841 = vxpose.xlu0.b32.cont [10/16] 0.0, 128
        %842 = vxpose.xlu0.b32.cont [11/16] 0.0, 128
        %843 = vxpose.xlu0.b32.cont [12/16] 0.0, 128
        %844 = vxpose.xlu0.b32.cont [13/16] 0.0, 128
        %845 = vxpose.xlu0.b32.cont [14/16] 0.0, 128
        %846 = vxpose.xlu0.b32.cont [15/16] 0.0, 128
        %847 = vxpose.xlu0.b32.end [16/16] 0.0, 128
        %v848 = vpop.trf.xlu0
        %v849 = vpop.trf.xlu0
        %v850 = vpop.trf.xlu0
        %v851 = vpop.trf.xlu0
        %v852 = vpop.trf.xlu0
        %v853 = vpop.trf.xlu0
        %v854 = vpop.trf.xlu0
        %v855 = vpop.trf.xlu0
        %v856 = vpop.trf.xlu0
        %v857 = vpop.trf.xlu0
        %v858 = vpop.trf.xlu0
        %v859 = vpop.trf.xlu0
        %v860 = vpop.trf.xlu0
        %v861 = vpop.trf.xlu0
        %v862 = vpop.trf.xlu0
        %v863 = vpop.trf.xlu0
        %v865 = vsel %vm718, %v848, 0
        %v868 = vsel %vm718, %v849, 0
        %v871 = vsel %vm718, %v850, 0
        %v874 = vsel %vm718, %v851, 0
        %v877 = vsel %vm718, %v852, 0
        %v880 = vsel %vm718, %v853, 0
        %v883 = vsel %vm718, %v854, 0
        %v886 = vsel %vm718, %v855, 0
        %v889 = vsel %vm718, %v856, 0
        %v892 = vsel %vm718, %v857, 0
        %v895 = vsel %vm718, %v858, 0
        %v898 = vsel %vm718, %v859, 0
        %v901 = vsel %vm718, %v860, 0
        %v904 = vsel %vm718, %v861, 0
        %v907 = vsel %vm718, %v862, 0
        %v910 = vsel %vm718, %v863, 0
        %912 = vmatpush.msra.mxu0 0.0
        %913 = vmatpush.msra.mxu0 0.0
        %914 = vmatpush.msra.mxu0 0.0
        %915 = vmatpush.msra.mxu0 0.0
        %916 = vmatpush.msra.mxu0 0.0
        %917 = vmatpush.msra.mxu0 0.0
        %918 = vmatpush.msra.mxu0 0.0
        %919 = vmatpush.msra.mxu0 0.0
        %920 = vmatpush.msra.mxu0 0.0
        %921 = vmatpush.msra.mxu0 0.0
        %922 = vmatpush.msra.mxu0 0.0
        %923 = vmatpush.msra.mxu0 0.0
        %924 = vmatpush.msra.mxu0 0.0
        %925 = vmatpush.msra.mxu0 0.0
        %926 = vmatpush.msra.mxu0 0.0
        %927 = vmatpush.msra.mxu0 %v684
        %928 = vmatmul.f32.gmra.mxu0 %v865
        %v929 = vpop.f32.mrf.mxu0
        %v930 = vadd.f32 %v785, %v929
        %931 = vmatmul.f32.gmra.mxu0 %v868
        %v932 = vpop.f32.mrf.mxu0
        %v933 = vadd.f32 %v788, %v932
        %934 = vmatmul.f32.gmra.mxu0 %v871
        %v935 = vpop.f32.mrf.mxu0
        %v936 = vadd.f32 %v791, %v935
        %937 = vmatmul.f32.gmra.mxu0 %v874
        %v938 = vpop.f32.mrf.mxu0
        %v939 = vadd.f32 %v794, %v938
        %940 = vmatmul.f32.gmra.mxu0 %v877
        %v941 = vpop.f32.mrf.mxu0
        %v942 = vadd.f32 %v797, %v941
        %943 = vmatmul.f32.gmra.mxu0 %v880
        %v944 = vpop.f32.mrf.mxu0
        %v945 = vadd.f32 %v800, %v944
        %946 = vmatmul.f32.gmra.mxu0 %v883
        %v947 = vpop.f32.mrf.mxu0
        %v948 = vadd.f32 %v803, %v947
        %949 = vmatmul.f32.gmra.mxu0 %v886
        %v950 = vpop.f32.mrf.mxu0
        %v951 = vadd.f32 %v806, %v950
        %952 = vmatmul.f32.gmra.mxu0 %v889
        %v953 = vpop.f32.mrf.mxu0
        %v954 = vadd.f32 %v809, %v953
        %955 = vmatmul.f32.gmra.mxu0 %v892
        %v956 = vpop.f32.mrf.mxu0
        %v957 = vadd.f32 %v812, %v956
        %958 = vmatmul.f32.gmra.mxu0 %v895
        %v959 = vpop.f32.mrf.mxu0
        %v960 = vadd.f32 %v815, %v959
        %961 = vmatmul.f32.gmra.mxu0 %v898
        %v962 = vpop.f32.mrf.mxu0
        %v963 = vadd.f32 %v818, %v962
        %964 = vmatmul.f32.gmra.mxu0 %v901
        %v965 = vpop.f32.mrf.mxu0
        %v966 = vadd.f32 %v821, %v965
        %967 = vmatmul.f32.gmra.mxu0 %v904
        %v968 = vpop.f32.mrf.mxu0
        %v969 = vadd.f32 %v824, %v968
        %970 = vmatmul.f32.gmra.mxu0 %v907
        %v971 = vpop.f32.mrf.mxu0
        %v972 = vadd.f32 %v827, %v971
        %973 = vmatmul.f32.gmra.mxu0 %v910
        %v974 = vpop.f32.mrf.mxu0
        %v975 = vadd.f32 %v830, %v974
        %976 = vdwg.mxu0
        %v977 = vmax.f32 %v930, 0.0
        %v978 = vmax.f32 %v933, 0.0
        %v979 = vmax.f32 %v936, 0.0
        %v980 = vmax.f32 %v939, 0.0
        %v981 = vmax.f32 %v942, 0.0
        %v982 = vmax.f32 %v945, 0.0
        %v983 = vmax.f32 %v948, 0.0
        %v984 = vmax.f32 %v951, 0.0
        %v985 = vmax.f32 %v954, 0.0
        %v986 = vmax.f32 %v957, 0.0
        %v987 = vmax.f32 %v960, 0.0
        %v988 = vmax.f32 %v963, 0.0
        %v989 = vmax.f32 %v966, 0.0
        %v990 = vmax.f32 %v969, 0.0
        %v991 = vmax.f32 %v972, 0.0
        %v992 = vmax.f32 %v975, 0.0
        %v993 = vld [vmem:[#allocation14] sm:$0xff]
        %v994 = vld [vmem:[#allocation14 + $0x8] sm:$0xff]
        %v995 = vld [vmem:[#allocation14 + $0x10] sm:$0xff]
        %v996 = vld [vmem:[#allocation14 + $0x18] sm:$0xff]
        %v997 = vld [vmem:[#allocation14 + $0x20] sm:$0xff]
        %v998 = vld [vmem:[#allocation14 + $0x28] sm:$0xff]
        %v999 = vld [vmem:[#allocation14 + $0x30] sm:$0xff]
        %v1000 = vld [vmem:[#allocation14 + $0x38] sm:$0xff]
        %v1001 = vld [vmem:[#allocation14 + $0x40] sm:$0xff]
        %v1002 = vld [vmem:[#allocation14 + $0x48] sm:$0xff]
        %v1003 = vld [vmem:[#allocation14 + $0x50] sm:$0xff]
        %v1004 = vld [vmem:[#allocation14 + $0x58] sm:$0xff]
        %v1005 = vld [vmem:[#allocation14 + $0x60] sm:$0xff]
        %v1006 = vld [vmem:[#allocation14 + $0x68] sm:$0xff]
        %v1007 = vld [vmem:[#allocation14 + $0x70] sm:$0xff]
        %v1008 = vld [vmem:[#allocation14 + $0x78] sm:$0xff]
        %v1009 = vld [vmem:[%s7] sm:$0x1]
        %v1011 = vperm.slane %v1009, 0
        %1013 = vmatpush.msra.mxu0 %v1008
        %1014 = vmatpush.msra.mxu0 %v1007
        %1015 = vmatpush.msra.mxu0 %v1006
        %1016 = vmatpush.msra.mxu0 %v1005
        %1017 = vmatpush.msra.mxu0 %v1004
        %1018 = vmatpush.msra.mxu0 %v1003
        %1019 = vmatpush.msra.mxu0 %v1002
        %1020 = vmatpush.msra.mxu0 %v1001
        %1021 = vmatpush.msra.mxu0 %v1000
        %1022 = vmatpush.msra.mxu0 %v999
        %1023 = vmatpush.msra.mxu0 %v998
        %1024 = vmatpush.msra.mxu0 %v997
        %1025 = vmatpush.msra.mxu0 %v996
        %1026 = vmatpush.msra.mxu0 %v995
        %1027 = vmatpush.msra.mxu0 %v994
        %1028 = vmatpush.msra.mxu0 %v993
        %1029 = vmatmul.f32.gmra.mxu0 %v977
        %v1030 = vpop.f32.mrf.mxu0
        %v1031 = vadd.f32 %v1011, %v1030
        %1032 = vmatmul.f32.gmra.mxu0 %v978
        %v1033 = vpop.f32.mrf.mxu0
        %v1034 = vadd.f32 %v1011, %v1033
        %1035 = vmatmul.f32.gmra.mxu0 %v979
        %v1036 = vpop.f32.mrf.mxu0
        %v1037 = vadd.f32 %v1011, %v1036
        %1038 = vmatmul.f32.gmra.mxu0 %v980
        %v1039 = vpop.f32.mrf.mxu0
        %v1040 = vadd.f32 %v1011, %v1039
        %1041 = vmatmul.f32.gmra.mxu0 %v981
        %v1042 = vpop.f32.mrf.mxu0
        %v1043 = vadd.f32 %v1011, %v1042
        %1044 = vmatmul.f32.gmra.mxu0 %v982
        %v1045 = vpop.f32.mrf.mxu0
        %v1046 = vadd.f32 %v1011, %v1045
        %1047 = vmatmul.f32.gmra.mxu0 %v983
        %v1048 = vpop.f32.mrf.mxu0
        %v1049 = vadd.f32 %v1011, %v1048
        %1050 = vmatmul.f32.gmra.mxu0 %v984
        %v1051 = vpop.f32.mrf.mxu0
        %v1052 = vadd.f32 %v1011, %v1051
        %1053 = vmatmul.f32.gmra.mxu0 %v985
        %v1054 = vpop.f32.mrf.mxu0
        %v1055 = vadd.f32 %v1011, %v1054
        %1056 = vmatmul.f32.gmra.mxu0 %v986
        %v1057 = vpop.f32.mrf.mxu0
        %v1058 = vadd.f32 %v1011, %v1057
        %1059 = vmatmul.f32.gmra.mxu0 %v987
        %v1060 = vpop.f32.mrf.mxu0
        %v1061 = vadd.f32 %v1011, %v1060
        %1062 = vmatmul.f32.gmra.mxu0 %v988
        %v1063 = vpop.f32.mrf.mxu0
        %v1064 = vadd.f32 %v1011, %v1063
        %1065 = vmatmul.f32.gmra.mxu0 %v989
        %v1066 = vpop.f32.mrf.mxu0
        %v1067 = vadd.f32 %v1011, %v1066
        %1068 = vmatmul.f32.gmra.mxu0 %v990
        %v1069 = vpop.f32.mrf.mxu0
        %v1070 = vadd.f32 %v1011, %v1069
        %1071 = vmatmul.f32.gmra.mxu0 %v991
        %v1072 = vpop.f32.mrf.mxu0
        %v1073 = vadd.f32 %v1011, %v1072
        %1074 = vmatmul.f32.gmra.mxu0 %v992
        %v1075 = vpop.f32.mrf.mxu0
        %v1076 = vadd.f32 %v1011, %v1075
        %1077 = vdwg.mxu0
        %v1078 = vld [vmem:[#allocation4] sm:$0xff]
        %1079 = vmatpush.msra.mxu0 %v1076
        %1080 = vmatpush.msra.mxu0 %v1073
        %1081 = vmatpush.msra.mxu0 %v1070
        %1082 = vmatpush.msra.mxu0 %v1067
        %1083 = vmatpush.msra.mxu0 %v1064
        %1084 = vmatpush.msra.mxu0 %v1061
        %1085 = vmatpush.msra.mxu0 %v1058
        %1086 = vmatpush.msra.mxu0 %v1055
        %1087 = vmatpush.msra.mxu0 %v1052
        %1088 = vmatpush.msra.mxu0 %v1049
        %1089 = vmatpush.msra.mxu0 %v1046
        %1090 = vmatpush.msra.mxu0 %v1043
        %1091 = vmatpush.msra.mxu0 %v1040
        %1092 = vmatpush.msra.mxu0 %v1037
        %1093 = vmatpush.msra.mxu0 %v1034
        %1094 = vmatpush.msra.mxu0 %v1031
        %1095 = vmatmul.f32.gmra.mxu0 %v683
        %v1096 = vpop.f32.mrf.mxu0
        %v1097 = vadd.f32 0.0, %v1096
        %1098 = vdwg.mxu0
        %v1099 = vadd.f32 %v1078, %v1097
        %1100 = vst [vmem:[#allocation4] sm:$0xff] %v1099
        %p1101 = scmp.eq.s32.totalorder %s32, 1
        // Predicated region
        $region113: #{tpu_custom_call.1} parent=71 // pred_check
          %p1102 = pneg %p1101
        $region114: #{tpu_custom_call.1} parent=71 // pred_check_branch
          %1104 = sbr.rel (%p1102) target = $region116
        $region115: #{tpu_custom_call.1} parent=71 // pred_region
          %v1105 = vld [vmem:[#allocation5] sm:$0xff]
          %v1106 = vld [vmem:[#allocation16] sm:$0xff]
          %v1107 = vld [vmem:[#allocation16 + $0x8] sm:$0xff]
          %v1108 = vld [vmem:[#allocation16 + $0x10] sm:$0xff]
          %v1109 = vld [vmem:[#allocation16 + $0x18] sm:$0xff]
          %v1110 = vld [vmem:[#allocation16 + $0x20] sm:$0xff]
          %v1111 = vld [vmem:[#allocation16 + $0x28] sm:$0xff]
          %v1112 = vld [vmem:[#allocation16 + $0x30] sm:$0xff]
          %v1113 = vld [vmem:[#allocation16 + $0x38] sm:$0xff]
          %v1114 = vld [vmem:[#allocation16 + $0x40] sm:$0xff]
          %v1115 = vld [vmem:[#allocation16 + $0x48] sm:$0xff]
          %v1116 = vld [vmem:[#allocation16 + $0x50] sm:$0xff]
          %v1117 = vld [vmem:[#allocation16 + $0x58] sm:$0xff]
          %v1118 = vld [vmem:[#allocation16 + $0x60] sm:$0xff]
          %v1119 = vld [vmem:[#allocation16 + $0x68] sm:$0xff]
          %v1120 = vld [vmem:[#allocation16 + $0x70] sm:$0xff]
          %v1121 = vld [vmem:[#allocation16 + $0x78] sm:$0xff]
          %v1122 = vld [vmem:[#allocation4] sm:$0xff]
          %v1123 = vld [vmem:[#allocation17] sm:$0xff]
          %v1124 = vld [vmem:[#allocation17 + $0x8] sm:$0xff]
          %v1125 = vld [vmem:[#allocation17 + $0x10] sm:$0xff]
          %v1126 = vld [vmem:[#allocation17 + $0x18] sm:$0xff]
          %v1127 = vld [vmem:[#allocation17 + $0x20] sm:$0xff]
          %v1128 = vld [vmem:[#allocation17 + $0x28] sm:$0xff]
          %v1129 = vld [vmem:[#allocation17 + $0x30] sm:$0xff]
          %v1130 = vld [vmem:[#allocation17 + $0x38] sm:$0xff]
          %v1131 = vld [vmem:[#allocation17 + $0x40] sm:$0xff]
          %v1132 = vld [vmem:[#allocation17 + $0x48] sm:$0xff]
          %v1133 = vld [vmem:[#allocation17 + $0x50] sm:$0xff]
          %v1134 = vld [vmem:[#allocation17 + $0x58] sm:$0xff]
          %v1135 = vld [vmem:[#allocation17 + $0x60] sm:$0xff]
          %v1136 = vld [vmem:[#allocation17 + $0x68] sm:$0xff]
          %v1137 = vld [vmem:[#allocation17 + $0x70] sm:$0xff]
          %v1138 = vld [vmem:[#allocation17 + $0x78] sm:$0xff]
          %1139 = vmatpush.msra.mxu0 %v1138
          %1140 = vmatpush.msra.mxu0 %v1137
          %1141 = vmatpush.msra.mxu0 %v1136
          %1142 = vmatpush.msra.mxu0 %v1135
          %1143 = vmatpush.msra.mxu0 %v1134
          %1144 = vmatpush.msra.mxu0 %v1133
          %1145 = vmatpush.msra.mxu0 %v1132
          %1146 = vmatpush.msra.mxu0 %v1131
          %1147 = vmatpush.msra.mxu0 %v1130
          %1148 = vmatpush.msra.mxu0 %v1129
          %1149 = vmatpush.msra.mxu0 %v1128
          %1150 = vmatpush.msra.mxu0 %v1127
          %1151 = vmatpush.msra.mxu0 %v1126
          %1152 = vmatpush.msra.mxu0 %v1125
          %1153 = vmatpush.msra.mxu0 %v1124
          %1154 = vmatpush.msra.mxu0 %v1123
          %1155 = vmatmul.f32.gmra.mxu0 %v1122
          %v1156 = vpop.f32.mrf.mxu0
          %v1157 = vadd.f32 0.0, %v1156
          %1158 = vdwg.mxu0
          %1159 = vmatpush.msra.mxu0 %v1121
          %1160 = vmatpush.msra.mxu0 %v1120
          %1161 = vmatpush.msra.mxu0 %v1119
          %1162 = vmatpush.msra.mxu0 %v1118
          %1163 = vmatpush.msra.mxu0 %v1117
          %1164 = vmatpush.msra.mxu0 %v1116
          %1165 = vmatpush.msra.mxu0 %v1115
          %1166 = vmatpush.msra.mxu0 %v1114
          %1167 = vmatpush.msra.mxu0 %v1113
          %1168 = vmatpush.msra.mxu0 %v1112
          %1169 = vmatpush.msra.mxu0 %v1111
          %1170 = vmatpush.msra.mxu0 %v1110
          %1171 = vmatpush.msra.mxu0 %v1109
          %1172 = vmatpush.msra.mxu0 %v1108
          %1173 = vmatpush.msra.mxu0 %v1107
          %1174 = vmatpush.msra.mxu0 %v1106
          %1175 = vmatmul.f32.gmra.mxu0 %v1105
          %v1176 = vpop.f32.mrf.mxu0
          %v1177 = vadd.f32 %v1157, %v1176
          %1178 = vdwg.mxu0
          %v1179 = vld [vmem:[%s10] sm:$0x1]
          %v1181 = vperm.slane %v1179, 0
          %v1183 = vadd.f32 %v1177, %v1181
          %v1184 = vmax.f32 %v1183, 0.0
          %v1185 = vld [vmem:[#allocation19] sm:$0xff]
          %v1186 = vld [vmem:[#allocation19 + $0x8] sm:$0xff]
          %v1187 = vld [vmem:[#allocation19 + $0x10] sm:$0xff]
          %v1188 = vld [vmem:[#allocation19 + $0x18] sm:$0xff]
          %v1189 = vld [vmem:[#allocation19 + $0x20] sm:$0xff]
          %v1190 = vld [vmem:[#allocation19 + $0x28] sm:$0xff]
          %v1191 = vld [vmem:[#allocation19 + $0x30] sm:$0xff]
          %v1192 = vld [vmem:[#allocation19 + $0x38] sm:$0xff]
          %v1193 = vld [vmem:[#allocation19 + $0x40] sm:$0xff]
          %v1194 = vld [vmem:[#allocation19 + $0x48] sm:$0xff]
          %v1195 = vld [vmem:[#allocation19 + $0x50] sm:$0xff]
          %v1196 = vld [vmem:[#allocation19 + $0x58] sm:$0xff]
          %v1197 = vld [vmem:[#allocation19 + $0x60] sm:$0xff]
          %v1198 = vld [vmem:[#allocation19 + $0x68] sm:$0xff]
          %v1199 = vld [vmem:[#allocation19 + $0x70] sm:$0xff]
          %v1200 = vld [vmem:[#allocation19 + $0x78] sm:$0xff]
          %v1201 = vld [vmem:[%s12] sm:$0x1]
          %v1203 = vperm.slane %v1201, 0
          %1205 = vmatpush.msra.mxu0 %v1200
          %1206 = vmatpush.msra.mxu0 %v1199
          %1207 = vmatpush.msra.mxu0 %v1198
          %1208 = vmatpush.msra.mxu0 %v1197
          %1209 = vmatpush.msra.mxu0 %v1196
          %1210 = vmatpush.msra.mxu0 %v1195
          %1211 = vmatpush.msra.mxu0 %v1194
          %1212 = vmatpush.msra.mxu0 %v1193
          %1213 = vmatpush.msra.mxu0 %v1192
          %1214 = vmatpush.msra.mxu0 %v1191
          %1215 = vmatpush.msra.mxu0 %v1190
          %1216 = vmatpush.msra.mxu0 %v1189
          %1217 = vmatpush.msra.mxu0 %v1188
          %1218 = vmatpush.msra.mxu0 %v1187
          %1219 = vmatpush.msra.mxu0 %v1186
          %1220 = vmatpush.msra.mxu0 %v1185
          %1221 = vmatmul.f32.gmra.mxu0 %v1184
          %v1222 = vpop.f32.mrf.mxu0
          %v1223 = vadd.f32 %v1203, %v1222
          %1224 = vdwg.mxu0
          %1225 = vst [vmem:[#allocation20] sm:$0xff] %v1223
        $region116: #{tpu_custom_call.1} parent=71 // pred_fallthru
          _
        // Predicated region
        $region117: #{tpu_custom_call.1} parent=71 // pred_check
          %p1226 = pneg %p328
        $region118: #{tpu_custom_call.1} parent=71 // pred_check_branch
          %1228 = sbr.rel (%p1226) target = $region120
        $region119: #{tpu_custom_call.1} parent=71 // pred_region
          %1230 = vsyncadd [#allocation7], 0
          %s1232 = sshll.u32 [#allocation20], 4
          %s1233 = int_to_ptr.vmem [resolvable:$true] %s1232
          %s1234 = sshll.u32 %s13, 4
          %s1235 = int_to_ptr.hbm [resolvable:$true] %s1234
          %1237 = dma.vmem_to_hbm [thread:$0]  %s1233, 128, %s1235, [#allocation7]
        $region120: #{tpu_custom_call.1} parent=71 // pred_fallthru
          _
        // Predicated region
        $region121: #{tpu_custom_call.1} parent=71 // pred_check
          %p1238 = pneg %p328
        $region122: #{tpu_custom_call.1} parent=71 // pred_check_branch
          %1240 = sbr.rel (%p1238) target = $region124
        $region123: #{tpu_custom_call.1} parent=71 // pred_region
          %1242 = dma.done [#allocation7], 128
        $region124: #{tpu_custom_call.1} parent=71 // pred_fallthru
          _
      $region72: #{tpu_custom_call.1} parent=5 // pred_fallthru
        _
      %p1243 = scmp.le.s32.totalorder 2, %s27
      // Predicated region
      $region125: #{tpu_custom_call.1} parent=5 // pred_check
        %p1244 = pneg %p1243
      $region126: #{tpu_custom_call.1} parent=5 // pred_check_branch
        %1246 = sbr.rel (%p1244) target = $region128
      $region127: #{tpu_custom_call.1} parent=5 // pred_region
        %s1247 = ssub.s32 %s27, 2
      $region128: #{tpu_custom_call.1} parent=5 // pred_fallthru
        _
    $region6: #{tpu_custom_call.1} parent=1 // loop_footer
      %s31 = sadd.s32 1, %s27
    $region7: #{tpu_custom_call.1} parent=1 // loop_footer_branch
      %26 = sbr.rel target = $region3
    $region8: #{tpu_custom_call.1} parent=1 // loop_exit
      _
    %1248 = vsyncpa [#allocation6], 1
    %s1249 = scalar_lea.sflag [#allocation6], 1
    %1250 = vsyncpa %s1249, 1
    %1251 = vsyncpa [#allocation9], 1
    %s1252 = scalar_lea.sflag [#allocation9], 1
    %1253 = vsyncpa %s1252, 1
    %1254 = vsyncpa [#allocation12], 1
    %1255 = vsyncpa [#allocation15], 1
    %1256 = vsyncpa [#allocation18], 1
    %1257 = vsyncpa [#allocation7], 1
    %s1258 = scalar_lea.sflag [#allocation7], 1
    %1259 = vsyncpa %s1258, 1

</llo_original>
